<compile_context>
chip_gen: v7x
topology: tpu7x:2x2x1
jax: 0.10.0
libtpu: 0.0.40
codegen_flags: <defaults>
</compile_context>

<pallas_src>
import jax
import jax.numpy as jnp
import numpy as np
from jax import lax
from jax.experimental import pallas as pl
from jax.experimental.pallas import tpu as pltpu


def _round_up(x, m):
    return ((x + m - 1) // m) * m


# ---------------------------------------------------------------------------
# Kernel: one T-chunk of (precompute input gates) -> LSTM recurrence -> FC+log_softmax
# ---------------------------------------------------------------------------
def _melody_lstm_kernel(x_ref, wih_ref, whh_ref, b_ref, fcw_ref, fcb_ref,
                        out_ref, xg_sc, hs_sc, h_sc, c_sc):
    """
    x_ref  : (Tblk*Bp, E)   bf16  time-major embedded tokens for this chunk
    wih_ref: (E, 4*Hp)      bf16  input->gates weights (gate blocks lane-aligned, i|f|g|o)
    whh_ref: (Hp, 4*Hp)     bf16  hidden->gates weights
    b_ref  : (1, 4*Hp)      f32   b_ih + b_hh (zero in padded lanes)
    fcw_ref: (Hp, Vp)       bf16  final linear weights (transposed, zero-padded)
    fcb_ref: (1, Vp)        f32   final linear bias (-1e30 in padded vocab lanes)
    out_ref: (Tblk*Bp, Vp)  f32   log-probabilities (lane-dense slab)
    xg_sc  : (Tblk, Bp, 4Hp) f32  precomputed input gates
    hs_sc  : (Tblk, Bp, Hp)  f32  per-step hidden states (for the batched FC)
    h_sc, c_sc : (Bp, Hp)    f32  recurrent state, carried across grid steps
    """
    Tblk, Bp, G = xg_sc.shape
    Hp = h_sc.shape[1]

    # Recurrent state persists across T-chunks; zero-init on the first chunk only
    # (PyTorch default h0 = c0 = 0).
    @pl.when(pl.program_id(0) == 0)
    def _():
        h_sc[...] = jnp.zeros_like(h_sc)
        c_sc[...] = jnp.zeros_like(c_sc)

    # ---- (perf #1/#6) input projection + bias for ALL timesteps of the chunk:
    # one large bf16 MXU matmul with f32 accumulation, off the serial path.
    xg = jnp.dot(x_ref[...], wih_ref[...],
                 preferred_element_type=jnp.float32) + b_ref[...]
    xg_sc[...] = xg.reshape(Tblk, Bp, G)

    whh = whh_ref[...]  # hoist weight load out of the time loop (bf16)

    # ---- (perf #2) recurrence: only h @ Whh + gate nonlinearities remain serial.
    def step(t, carry):
        gates = xg_sc[t] + jnp.dot(h_sc[...].astype(jnp.bfloat16), whh,
                                   preferred_element_type=jnp.float32)
        # (perf #4) Hp is a multiple of 128 -> each gate slice is a full
        # lane-aligned block (no cross-lane extracts on the critical path).
        i_g = jax.nn.sigmoid(gates[:, 0 * Hp:1 * Hp])
        f_g = jax.nn.sigmoid(gates[:, 1 * Hp:2 * Hp])
        g_g = jnp.tanh(gates[:, 2 * Hp:3 * Hp])
        o_g = jax.nn.sigmoid(gates[:, 3 * Hp:4 * Hp])
        c_new = f_g * c_sc[...] + i_g * g_g
        h_new = o_g * jnp.tanh(c_new)
        c_sc[...] = c_new
        h_sc[...] = h_new
        hs_sc[t] = h_new
        return carry

    # (perf #3) unroll so the scheduler can overlap MXU/EUP/VPU work of adjacent steps.
    lax.fori_loop(0, Tblk, step, 0, unroll=True)

    # ---- (perf #2/#8) FC + log_softmax batched over all Tblk*Bp rows, one
    # lane-dense slab store (Vp is a multiple of 128 -> unmasked vst).
    hs = hs_sc[...].reshape(Tblk * Bp, Hp).astype(jnp.bfloat16)
    logits = jnp.dot(hs, fcw_ref[...],
                     preferred_element_type=jnp.float32) + fcb_ref[...]
    m = jnp.max(logits, axis=-1, keepdims=True)
    z = logits - m
    lse = jnp.log(jnp.sum(jnp.exp(z), axis=-1, keepdims=True))
    out_ref[...] = (z - lse).astype(out_ref.dtype)


# ---------------------------------------------------------------------------
# Parameter packing (JAX glue)
# ---------------------------------------------------------------------------
def _pack_gate_cols(w, H, Hp):
    """(K, 4H) -> (K, 4*Hp): place each gate's H columns at a lane-aligned offset."""
    K = w.shape[0]
    out = jnp.zeros((K, 4 * Hp), w.dtype)
    for g in range(4):
        out = out.at[:, g * Hp:g * Hp + H].set(w[:, g * H:(g + 1) * H])
    return out


def _pack_params(params, Hp, Vp):
    w_ih = params["w_ih"]          # (4H, E) bf16
    w_hh = params["w_hh"]          # (4H, H) bf16
    fc_w = params["fc_w"]          # (V, H)  bf16
    H = w_hh.shape[1]
    V = fc_w.shape[0]

    wih_p = _pack_gate_cols(jnp.transpose(w_ih), H, Hp)                      # (E, 4Hp)
    whh_p = jnp.zeros((Hp, 4 * Hp), w_hh.dtype)
    whh_p = whh_p.at[:H].set(_pack_gate_cols(jnp.transpose(w_hh), H, Hp))    # (Hp, 4Hp)
    b = (params["b_ih"] + params["b_hh"]).reshape(1, 4 * H).astype(jnp.float32)
    b_p = _pack_gate_cols(b, H, Hp)                                          # (1, 4Hp)
    fcw_p = jnp.zeros((Hp, Vp), fc_w.dtype).at[:H, :V].set(jnp.transpose(fc_w))
    # Padded vocab columns get a huge negative bias so log_softmax ignores them.
    fcb_p = jnp.full((1, Vp), -1e30, jnp.float32).at[0, :V].set(
        params["fc_b"].astype(jnp.float32))
    return wih_p, whh_p, b_p, fcw_p, fcb_p


# ---------------------------------------------------------------------------
# Forward wrapper
# ---------------------------------------------------------------------------
def melody_lstm_forward(note_seq, params, *, t_block=None):
    """note_seq: (B, T) int token ids. Returns (B, T, V) log-probs (float32)."""
    ids = jnp.atleast_2d(jnp.asarray(note_seq, jnp.int32))
    B, T = ids.shape
    emb = params["embedding"]                       # (V, E) bf16
    V, E = emb.shape
    H = params["w_hh"].shape[1]

    # Lane/sublane-friendly padded sizes (perf #4/#7/#8).
    Bp = _round_up(B, 8)
    Hp = _round_up(H, 128)
    Vp = _round_up(V, 128)
    G = 4 * Hp
    if t_block is None:
        t_block = T if T <= 128 else 128
    if T % t_block != 0:
        t_block = T

    wih_p, whh_p, b_p, fcw_p, fcb_p = _pack_params(params, Hp, Vp)

    # Embedding gather (memory gather, not a matmul) stays in JAX glue; go
    # time-major, pad the batch to the sublane height and flatten to 2-D rows.
    embeds = jnp.take(emb, ids, axis=0)             # (B, T, E) bf16
    x = jnp.transpose(embeds, (1, 0, 2))            # (T, B, E)
    if Bp != B:
        x = jnp.pad(x, ((0, 0), (0, Bp - B), (0, 0)))
    x2d = x.reshape(T * Bp, E)

    rows = t_block * Bp
    out2d = pl.pallas_call(
        _melody_lstm_kernel,
        out_shape=jax.ShapeDtypeStruct((T * Bp, Vp), jnp.float32),
        grid_spec=pltpu.PrefetchScalarGridSpec(
            num_scalar_prefetch=0,
            grid=(T // t_block,),                     # perf #9: pipelined T-chunks
            in_specs=[
                pl.BlockSpec((rows, E), lambda t: (t, 0)),    # x chunk (double-buffered)
                pl.BlockSpec((E, G), lambda t: (0, 0)),       # Wih  (resident across chunks)
                pl.BlockSpec((Hp, G), lambda t: (0, 0)),      # Whh
                pl.BlockSpec((1, G), lambda t: (0, 0)),       # b_ih + b_hh
                pl.BlockSpec((Hp, Vp), lambda t: (0, 0)),     # fc weight
                pl.BlockSpec((1, Vp), lambda t: (0, 0)),      # fc bias (pad lanes = -1e30)
            ],
            out_specs=pl.BlockSpec((rows, Vp), lambda t: (t, 0)),
            scratch_shapes=[
                pltpu.VMEM((t_block, Bp, G), jnp.float32),    # precomputed input gates
                pltpu.VMEM((t_block, Bp, Hp), jnp.float32),   # per-step hidden states
                pltpu.VMEM((Bp, Hp), jnp.float32),            # h (carried across chunks)
                pltpu.VMEM((Bp, Hp), jnp.float32),            # c (carried across chunks)
            ]),
        compiler_params=pltpu.CompilerParams(
            dimension_semantics=("arbitrary",)),              # sequential recurrence over chunks
    )(x2d, wih_p, whh_p, b_p, fcw_p, fcb_p)

    out = out2d.reshape(T, Bp, Vp)[:, :B, :V]
    return jnp.transpose(out, (1, 0, 2))                      # (B, T, V)


# ---------------------------------------------------------------------------
# Parameters (PyTorch module shapes; matmul weights stored in bf16, biases f32)
# ---------------------------------------------------------------------------
def init_params(key, output_size, embedding_size, hidden_size):
    V, E, H = output_size, embedding_size, hidden_size
    keys = jax.random.split(key, 7)
    k = 1.0 / np.sqrt(H)
    return {
        "embedding": jax.random.normal(keys[0], (V, E), jnp.float32).astype(jnp.bfloat16),
        "w_ih": jax.random.uniform(keys[1], (4 * H, E), jnp.float32, -k, k).astype(jnp.bfloat16),
        "w_hh": jax.random.uniform(keys[2], (4 * H, H), jnp.float32, -k, k).astype(jnp.bfloat16),
        "b_ih": jax.random.uniform(keys[3], (4 * H,), jnp.float32, -k, k),
        "b_hh": jax.random.uniform(keys[4], (4 * H,), jnp.float32, -k, k),
        "fc_w": jax.random.uniform(keys[5], (V, H), jnp.float32, -k, k).astype(jnp.bfloat16),
        "fc_b": jax.random.uniform(keys[6], (V,), jnp.float32, -k, k),
    }


# ---------------------------------------------------------------------------
# Pure-JAX reference (mirrors the kernel numerics: bf16 weights / bf16-rounded h
# fed to f32-accumulating matmuls; gate order i,f,g,o; b = b_ih + b_hh; h0=c0=0)
# ---------------------------------------------------------------------------
def melody_lstm_reference(note_seq, params):
    ids = jnp.atleast_2d(jnp.asarray(note_seq, jnp.int32))
    H = params["w_hh"].shape[1]
    emb = params["embedding"].astype(jnp.float32)
    wih = params["w_ih"].astype(jnp.float32).T            # (E, 4H)
    whh = params["w_hh"].astype(jnp.float32).T            # (H, 4H)
    b = (params["b_ih"] + params["b_hh"]).reshape(1, -1)  # (1, 4H)
    fcw = params["fc_w"].astype(jnp.float32).T             # (H, V)
    fcb = params["fc_b"].reshape(1, -1)                    # (1, V)

    x = jnp.take(emb, ids, axis=0)                         # (B, T, E)
    xg = jnp.einsum("bte,eg->btg", x, wih) + b             # bias folded (matches kernel)
    xg_tm = jnp.transpose(xg, (1, 0, 2))                   # (T, B, 4H)

    B = ids.shape[0]

    def step(carry, xg_t):
        h, c = carry
        h16 = h.astype(jnp.bfloat16).astype(jnp.float32)
        gates = xg_t + h16 @ whh
        i_g = jax.nn.sigmoid(gates[:, 0 * H:1 * H])
        f_g = jax.nn.sigmoid(gates[:, 1 * H:2 * H])
        g_g = jnp.tanh(gates[:, 2 * H:3 * H])
        o_g = jax.nn.sigmoid(gates[:, 3 * H:4 * H])
        c = f_g * c + i_g * g_g
        h = o_g * jnp.tanh(c)
        return (h, c), h

    h0 = jnp.zeros((B, H), jnp.float32)
    c0 = jnp.zeros((B, H), jnp.float32)
    _, hs = lax.scan(step, (h0, c0), xg_tm)                # (T, B, H)
    hs = jnp.transpose(hs, (1, 0, 2))                      # (B, T, H)
    hs16 = hs.astype(jnp.bfloat16).astype(jnp.float32)
    logits = hs16 @ fcw + fcb
    return jax.nn.log_softmax(logits, axis=2)


if __name__ == "__main__":
    # Small shapes consistent with the module's forward:
    #   note_seq: (batch=2, seq_len=8) integer tokens in [0, output_size)
    output_size = 16     # vocabulary size V
    embedding_size = 32  # E
    hidden_size = 32     # H
    batch, seq_len = 2, 8

    key = jax.random.PRNGKey(0)
    k_params, k_ids = jax.random.split(key)
    params = init_params(k_params, output_size, embedding_size, hidden_size)
    note_seq = jax.random.randint(k_ids, (batch, seq_len), 0, output_size,
                                  dtype=jnp.int32)

    # t_block=4 -> grid of 2 T-chunks, exercising the carried h/c state.
    out = melody_lstm_forward(note_seq, params, t_block=4)
    out = jax.block_until_ready(out)
    assert out.shape == (batch, seq_len, output_size), out.shape

    ref = jax.block_until_ready(melody_lstm_reference(note_seq, params))
    np.testing.assert_allclose(np.asarray(out), np.asarray(ref),
                               rtol=5e-4, atol=5e-4)
    # log_softmax rows must sum to 1 in prob space.
    np.testing.assert_allclose(np.exp(np.asarray(out)).sum(-1), 1.0,
                               rtol=1e-5, atol=1e-5)

    print("KERNEL_OK")
</pallas_src>

<mosaic_0001>
module attributes {stable_mosaic.version = 11 : i64} {
  func.func @_melody_lstm_kernel(%arg0: i32, %arg1: memref<32x32xbf16, #tpu.memory_space<vmem>>, %arg2: memref<32x512xbf16, #tpu.memory_space<vmem>>, %arg3: memref<128x512xbf16, #tpu.memory_space<vmem>>, %arg4: memref<1x512xf32, #tpu.memory_space<vmem>>, %arg5: memref<128x128xbf16, #tpu.memory_space<vmem>>, %arg6: memref<1x128xf32, #tpu.memory_space<vmem>>, %arg7: memref<32x128xf32, #tpu.memory_space<vmem>>, %arg8: memref<4x8x512xf32, #tpu.memory_space<vmem>>, %arg9: memref<4x8x128xf32, #tpu.memory_space<vmem>>, %arg10: memref<8x128xf32, #tpu.memory_space<vmem>>, %arg11: memref<8x128xf32, #tpu.memory_space<vmem>>) attributes {dimension_semantics = [#tpu.dimension_semantics<arbitrary>], iteration_bounds = array<i64: 2>, scalar_prefetch = 0 : i64, scratch_operands = 4 : i64, tpu.core_type = #tpu.core_type<tc>, window_params = [{transform_indices = @transform_0, window_bounds = array<i64: 32, 32>}, {pipeline_mode = #tpu.pipeline_mode<synchronous>, transform_indices = @transform_1, window_bounds = array<i64: 32, 512>}, {pipeline_mode = #tpu.pipeline_mode<synchronous>, transform_indices = @transform_2, window_bounds = array<i64: 128, 512>}, {pipeline_mode = #tpu.pipeline_mode<synchronous>, transform_indices = @transform_3, window_bounds = array<i64: 1, 512>}, {pipeline_mode = #tpu.pipeline_mode<synchronous>, transform_indices = @transform_4, window_bounds = array<i64: 128, 128>}, {pipeline_mode = #tpu.pipeline_mode<synchronous>, transform_indices = @transform_5, window_bounds = array<i64: 1, 128>}, {transform_indices = @transform_6, window_bounds = array<i64: 32, 128>}]} {
    %c0_i32 = arith.constant 0 : i32
    %0 = arith.cmpi eq, %arg0, %c0_i32 : i32
    %1 = arith.extui %0 : i1 to i32
    %c0_i32_0 = arith.constant 0 : i32
    %2 = arith.cmpi ne, %1, %c0_i32_0 : i32
    scf.if %2 {
      %cst_88 = arith.constant 0.000000e+00 : f32
      %187 = vector.broadcast %cst_88 : f32 to vector<8x128xf32>
      %c0_89 = arith.constant 0 : index
      %c0_90 = arith.constant 0 : index
      %188 = vector.load %arg10[%c0_89, %c0_90] : memref<8x128xf32, #tpu.memory_space<vmem>>, vector<8x128xf32>
      tpu.vector_store %arg10[%c0_89, %c0_90], %187 {strides = array<i32>} : memref<8x128xf32, #tpu.memory_space<vmem>>, vector<8x128xf32>,
      %cst_91 = arith.constant 0.000000e+00 : f32
      %189 = vector.broadcast %cst_91 : f32 to vector<8x128xf32>
      %c0_92 = arith.constant 0 : index
      %c0_93 = arith.constant 0 : index
      %190 = vector.load %arg11[%c0_92, %c0_93] : memref<8x128xf32, #tpu.memory_space<vmem>>, vector<8x128xf32>
      tpu.vector_store %arg11[%c0_92, %c0_93], %189 {strides = array<i32>} : memref<8x128xf32, #tpu.memory_space<vmem>>, vector<8x128xf32>,
    } else {
    }
    %c0 = arith.constant 0 : index
    %c0_1 = arith.constant 0 : index
    %3 = vector.load %arg1[%c0, %c0_1] : memref<32x32xbf16, #tpu.memory_space<vmem>>, vector<32x32xbf16>
    %c0_2 = arith.constant 0 : index
    %c0_3 = arith.constant 0 : index
    %4 = vector.load %arg2[%c0_2, %c0_3] : memref<32x512xbf16, #tpu.memory_space<vmem>>, vector<32x512xbf16>
    %cst = arith.constant dense<0.000000e+00> : vector<32x512xf32>
    %5 = tpu.matmul %3, %4, %cst {dimension_numbers = #tpu.dot_dimension_numbers<[1], [0], [0], [1], [0, 0, 1, 1], [], []>} : vector<32x32xbf16>, vector<32x512xbf16>, vector<32x512xf32> -> vector<32x512xf32>
    %c0_4 = arith.constant 0 : index
    %c0_5 = arith.constant 0 : index
    %6 = vector.load %arg4[%c0_4, %c0_5] : memref<1x512xf32, #tpu.memory_space<vmem>>, vector<1x512xf32>
    %7 = vector.broadcast %6 : vector<1x512xf32> to vector<32x512xf32>
    %8 = arith.addf %5, %7 : vector<32x512xf32>
    %9 = vector.shape_cast %8 : vector<32x512xf32> to vector<4x8x512xf32>
    %c0_6 = arith.constant 0 : index
    %c0_7 = arith.constant 0 : index
    %c0_8 = arith.constant 0 : index
    %10 = vector.load %arg8[%c0_6, %c0_7, %c0_8] : memref<4x8x512xf32, #tpu.memory_space<vmem>>, vector<4x8x512xf32>
    tpu.vector_store %arg8[%c0_6, %c0_7, %c0_8], %9 {strides = array<i32>} : memref<4x8x512xf32, #tpu.memory_space<vmem>>, vector<4x8x512xf32>,
    %c0_9 = arith.constant 0 : index
    %c0_10 = arith.constant 0 : index
    %11 = vector.load %arg3[%c0_9, %c0_10] : memref<128x512xbf16, #tpu.memory_space<vmem>>, vector<128x512xbf16>
    %c0_i32_11 = arith.constant 0 : i32
    %12 = arith.index_cast %c0_i32_11 : i32 to index
    %c0_12 = arith.constant 0 : index
    %c0_13 = arith.constant 0 : index
    %13 = vector.load %arg8[%12, %c0_12, %c0_13] : memref<4x8x512xf32, #tpu.memory_space<vmem>>, vector<1x8x512xf32>
    %14 = vector.shape_cast %13 : vector<1x8x512xf32> to vector<8x512xf32>
    %c0_14 = arith.constant 0 : index
    %c0_15 = arith.constant 0 : index
    %15 = vector.load %arg10[%c0_14, %c0_15] : memref<8x128xf32, #tpu.memory_space<vmem>>, vector<8x128xf32>
    %16 = arith.truncf %15 : vector<8x128xf32> to vector<8x128xbf16>
    %cst_16 = arith.constant dense<0.000000e+00> : vector<8x512xf32>
    %17 = tpu.matmul %16, %11, %cst_16 {dimension_numbers = #tpu.dot_dimension_numbers<[1], [0], [0], [1], [0, 0, 1, 1], [], []>} : vector<8x128xbf16>, vector<128x512xbf16>, vector<8x512xf32> -> vector<8x512xf32>
    %18 = arith.addf %14, %17 : vector<8x512xf32>
    %19 = vector.extract_strided_slice %18 {offsets = [0, 0], sizes = [8, 128], strides = [1, 1]} : vector<8x512xf32> to vector<8x128xf32>
    %20 = arith.negf %19 : vector<8x128xf32>
    %21 = math.exp %20 : vector<8x128xf32>
    %cst_17 = arith.constant 1.000000e+00 : f32
    %22 = vector.broadcast %cst_17 : f32 to vector<8x128xf32>
    %23 = arith.addf %22, %21 : vector<8x128xf32>
    %24 = arith.divf %22, %23 : vector<8x128xf32>
    %25 = vector.extract_strided_slice %18 {offsets = [0, 128], sizes = [8, 128], strides = [1, 1]} : vector<8x512xf32> to vector<8x128xf32>
    %26 = arith.negf %25 : vector<8x128xf32>
    %27 = math.exp %26 : vector<8x128xf32>
    %cst_18 = arith.constant 1.000000e+00 : f32
    %28 = vector.broadcast %cst_18 : f32 to vector<8x128xf32>
    %29 = arith.addf %28, %27 : vector<8x128xf32>
    %30 = arith.divf %28, %29 : vector<8x128xf32>
    %31 = vector.extract_strided_slice %18 {offsets = [0, 256], sizes = [8, 128], strides = [1, 1]} : vector<8x512xf32> to vector<8x128xf32>
    %32 = math.tanh %31 : vector<8x128xf32>
    %33 = vector.extract_strided_slice %18 {offsets = [0, 384], sizes = [8, 128], strides = [1, 1]} : vector<8x512xf32> to vector<8x128xf32>
    %34 = arith.negf %33 : vector<8x128xf32>
    %35 = math.exp %34 : vector<8x128xf32>
    %cst_19 = arith.constant 1.000000e+00 : f32
    %36 = vector.broadcast %cst_19 : f32 to vector<8x128xf32>
    %37 = arith.addf %36, %35 : vector<8x128xf32>
    %38 = arith.divf %36, %37 : vector<8x128xf32>
    %c0_20 = arith.constant 0 : index
    %c0_21 = arith.constant 0 : index
    %39 = vector.load %arg11[%c0_20, %c0_21] : memref<8x128xf32, #tpu.memory_space<vmem>>, vector<8x128xf32>
    %40 = arith.mulf %30, %39 : vector<8x128xf32>
    %41 = arith.mulf %24, %32 : vector<8x128xf32>
    %42 = arith.addf %40, %41 : vector<8x128xf32>
    %43 = math.tanh %42 : vector<8x128xf32>
    %44 = arith.mulf %38, %43 : vector<8x128xf32>
    %c0_22 = arith.constant 0 : index
    %c0_23 = arith.constant 0 : index
    %45 = vector.load %arg11[%c0_22, %c0_23] : memref<8x128xf32, #tpu.memory_space<vmem>>, vector<8x128xf32>
    tpu.vector_store %arg11[%c0_22, %c0_23], %42 {strides = array<i32>} : memref<8x128xf32, #tpu.memory_space<vmem>>, vector<8x128xf32>,
    %c0_24 = arith.constant 0 : index
    %c0_25 = arith.constant 0 : index
    %46 = vector.load %arg10[%c0_24, %c0_25] : memref<8x128xf32, #tpu.memory_space<vmem>>, vector<8x128xf32>
    tpu.vector_store %arg10[%c0_24, %c0_25], %44 {strides = array<i32>} : memref<8x128xf32, #tpu.memory_space<vmem>>, vector<8x128xf32>,
    %47 = arith.index_cast %c0_i32_11 : i32 to index
    %c0_26 = arith.constant 0 : index
    %c0_27 = arith.constant 0 : index
    %48 = vector.load %arg9[%47, %c0_26, %c0_27] : memref<4x8x128xf32, #tpu.memory_space<vmem>>, vector<1x8x128xf32>
    %49 = vector.shape_cast %48 : vector<1x8x128xf32> to vector<8x128xf32>
    %50 = vector.shape_cast %44 : vector<8x128xf32> to vector<1x8x128xf32>
    tpu.vector_store %arg9[%47, %c0_26, %c0_27], %50 {strides = array<i32>} : memref<4x8x128xf32, #tpu.memory_space<vmem>>, vector<1x8x128xf32>,
    %c1_i32 = arith.constant 1 : i32
    %51 = arith.index_cast %c1_i32 : i32 to index
    %c0_28 = arith.constant 0 : index
    %c0_29 = arith.constant 0 : index
    %52 = vector.load %arg8[%51, %c0_28, %c0_29] : memref<4x8x512xf32, #tpu.memory_space<vmem>>, vector<1x8x512xf32>
    %53 = vector.shape_cast %52 : vector<1x8x512xf32> to vector<8x512xf32>
    %c0_30 = arith.constant 0 : index
    %c0_31 = arith.constant 0 : index
    %54 = vector.load %arg10[%c0_30, %c0_31] : memref<8x128xf32, #tpu.memory_space<vmem>>, vector<8x128xf32>
    %55 = arith.truncf %54 : vector<8x128xf32> to vector<8x128xbf16>
    %cst_32 = arith.constant dense<0.000000e+00> : vector<8x512xf32>
    %56 = tpu.matmul %55, %11, %cst_32 {dimension_numbers = #tpu.dot_dimension_numbers<[1], [0], [0], [1], [0, 0, 1, 1], [], []>} : vector<8x128xbf16>, vector<128x512xbf16>, vector<8x512xf32> -> vector<8x512xf32>
    %57 = arith.addf %53, %56 : vector<8x512xf32>
    %58 = vector.extract_strided_slice %57 {offsets = [0, 0], sizes = [8, 128], strides = [1, 1]} : vector<8x512xf32> to vector<8x128xf32>
    %59 = arith.negf %58 : vector<8x128xf32>
    %60 = math.exp %59 : vector<8x128xf32>
    %cst_33 = arith.constant 1.000000e+00 : f32
    %61 = vector.broadcast %cst_33 : f32 to vector<8x128xf32>
    %62 = arith.addf %61, %60 : vector<8x128xf32>
    %63 = arith.divf %61, %62 : vector<8x128xf32>
    %64 = vector.extract_strided_slice %57 {offsets = [0, 128], sizes = [8, 128], strides = [1, 1]} : vector<8x512xf32> to vector<8x128xf32>
    %65 = arith.negf %64 : vector<8x128xf32>
    %66 = math.exp %65 : vector<8x128xf32>
    %cst_34 = arith.constant 1.000000e+00 : f32
    %67 = vector.broadcast %cst_34 : f32 to vector<8x128xf32>
    %68 = arith.addf %67, %66 : vector<8x128xf32>
    %69 = arith.divf %67, %68 : vector<8x128xf32>
    %70 = vector.extract_strided_slice %57 {offsets = [0, 256], sizes = [8, 128], strides = [1, 1]} : vector<8x512xf32> to vector<8x128xf32>
    %71 = math.tanh %70 : vector<8x128xf32>
    %72 = vector.extract_strided_slice %57 {offsets = [0, 384], sizes = [8, 128], strides = [1, 1]} : vector<8x512xf32> to vector<8x128xf32>
    %73 = arith.negf %72 : vector<8x128xf32>
    %74 = math.exp %73 : vector<8x128xf32>
    %cst_35 = arith.constant 1.000000e+00 : f32
    %75 = vector.broadcast %cst_35 : f32 to vector<8x128xf32>
    %76 = arith.addf %75, %74 : vector<8x128xf32>
    %77 = arith.divf %75, %76 : vector<8x128xf32>
    %c0_36 = arith.constant 0 : index
    %c0_37 = arith.constant 0 : index
    %78 = vector.load %arg11[%c0_36, %c0_37] : memref<8x128xf32, #tpu.memory_space<vmem>>, vector<8x128xf32>
    %79 = arith.mulf %69, %78 : vector<8x128xf32>
    %80 = arith.mulf %63, %71 : vector<8x128xf32>
    %81 = arith.addf %79, %80 : vector<8x128xf32>
    %82 = math.tanh %81 : vector<8x128xf32>
    %83 = arith.mulf %77, %82 : vector<8x128xf32>
    %c0_38 = arith.constant 0 : index
    %c0_39 = arith.constant 0 : index
    %84 = vector.load %arg11[%c0_38, %c0_39] : memref<8x128xf32, #tpu.memory_space<vmem>>, vector<8x128xf32>
    tpu.vector_store %arg11[%c0_38, %c0_39], %81 {strides = array<i32>} : memref<8x128xf32, #tpu.memory_space<vmem>>, vector<8x128xf32>,
    %c0_40 = arith.constant 0 : index
    %c0_41 = arith.constant 0 : index
    %85 = vector.load %arg10[%c0_40, %c0_41] : memref<8x128xf32, #tpu.memory_space<vmem>>, vector<8x128xf32>
    tpu.vector_store %arg10[%c0_40, %c0_41], %83 {strides = array<i32>} : memref<8x128xf32, #tpu.memory_space<vmem>>, vector<8x128xf32>,
    %86 = arith.index_cast %c1_i32 : i32 to index
    %c0_42 = arith.constant 0 : index
    %c0_43 = arith.constant 0 : index
    %87 = vector.load %arg9[%86, %c0_42, %c0_43] : memref<4x8x128xf32, #tpu.memory_space<vmem>>, vector<1x8x128xf32>
    %88 = vector.shape_cast %87 : vector<1x8x128xf32> to vector<8x128xf32>
    %89 = vector.shape_cast %83 : vector<8x128xf32> to vector<1x8x128xf32>
    tpu.vector_store %arg9[%86, %c0_42, %c0_43], %89 {strides = array<i32>} : memref<4x8x128xf32, #tpu.memory_space<vmem>>, vector<1x8x128xf32>,
    %c2_i32 = arith.constant 2 : i32
    %90 = arith.index_cast %c2_i32 : i32 to index
    %c0_44 = arith.constant 0 : index
    %c0_45 = arith.constant 0 : index
    %91 = vector.load %arg8[%90, %c0_44, %c0_45] : memref<4x8x512xf32, #tpu.memory_space<vmem>>, vector<1x8x512xf32>
    %92 = vector.shape_cast %91 : vector<1x8x512xf32> to vector<8x512xf32>
    %c0_46 = arith.constant 0 : index
    %c0_47 = arith.constant 0 : index
    %93 = vector.load %arg10[%c0_46, %c0_47] : memref<8x128xf32, #tpu.memory_space<vmem>>, vector<8x128xf32>
    %94 = arith.truncf %93 : vector<8x128xf32> to vector<8x128xbf16>
    %cst_48 = arith.constant dense<0.000000e+00> : vector<8x512xf32>
    %95 = tpu.matmul %94, %11, %cst_48 {dimension_numbers = #tpu.dot_dimension_numbers<[1], [0], [0], [1], [0, 0, 1, 1], [], []>} : vector<8x128xbf16>, vector<128x512xbf16>, vector<8x512xf32> -> vector<8x512xf32>
    %96 = arith.addf %92, %95 : vector<8x512xf32>
    %97 = vector.extract_strided_slice %96 {offsets = [0, 0], sizes = [8, 128], strides = [1, 1]} : vector<8x512xf32> to vector<8x128xf32>
    %98 = arith.negf %97 : vector<8x128xf32>
    %99 = math.exp %98 : vector<8x128xf32>
    %cst_49 = arith.constant 1.000000e+00 : f32
    %100 = vector.broadcast %cst_49 : f32 to vector<8x128xf32>
    %101 = arith.addf %100, %99 : vector<8x128xf32>
    %102 = arith.divf %100, %101 : vector<8x128xf32>
    %103 = vector.extract_strided_slice %96 {offsets = [0, 128], sizes = [8, 128], strides = [1, 1]} : vector<8x512xf32> to vector<8x128xf32>
    %104 = arith.negf %103 : vector<8x128xf32>
    %105 = math.exp %104 : vector<8x128xf32>
    %cst_50 = arith.constant 1.000000e+00 : f32
    %106 = vector.broadcast %cst_50 : f32 to vector<8x128xf32>
    %107 = arith.addf %106, %105 : vector<8x128xf32>
    %108 = arith.divf %106, %107 : vector<8x128xf32>
    %109 = vector.extract_strided_slice %96 {offsets = [0, 256], sizes = [8, 128], strides = [1, 1]} : vector<8x512xf32> to vector<8x128xf32>
    %110 = math.tanh %109 : vector<8x128xf32>
    %111 = vector.extract_strided_slice %96 {offsets = [0, 384], sizes = [8, 128], strides = [1, 1]} : vector<8x512xf32> to vector<8x128xf32>
    %112 = arith.negf %111 : vector<8x128xf32>
    %113 = math.exp %112 : vector<8x128xf32>
    %cst_51 = arith.constant 1.000000e+00 : f32
    %114 = vector.broadcast %cst_51 : f32 to vector<8x128xf32>
    %115 = arith.addf %114, %113 : vector<8x128xf32>
    %116 = arith.divf %114, %115 : vector<8x128xf32>
    %c0_52 = arith.constant 0 : index
    %c0_53 = arith.constant 0 : index
    %117 = vector.load %arg11[%c0_52, %c0_53] : memref<8x128xf32, #tpu.memory_space<vmem>>, vector<8x128xf32>
    %118 = arith.mulf %108, %117 : vector<8x128xf32>
    %119 = arith.mulf %102, %110 : vector<8x128xf32>
    %120 = arith.addf %118, %119 : vector<8x128xf32>
    %121 = math.tanh %120 : vector<8x128xf32>
    %122 = arith.mulf %116, %121 : vector<8x128xf32>
    %c0_54 = arith.constant 0 : index
    %c0_55 = arith.constant 0 : index
    %123 = vector.load %arg11[%c0_54, %c0_55] : memref<8x128xf32, #tpu.memory_space<vmem>>, vector<8x128xf32>
    tpu.vector_store %arg11[%c0_54, %c0_55], %120 {strides = array<i32>} : memref<8x128xf32, #tpu.memory_space<vmem>>, vector<8x128xf32>,
    %c0_56 = arith.constant 0 : index
    %c0_57 = arith.constant 0 : index
    %124 = vector.load %arg10[%c0_56, %c0_57] : memref<8x128xf32, #tpu.memory_space<vmem>>, vector<8x128xf32>
    tpu.vector_store %arg10[%c0_56, %c0_57], %122 {strides = array<i32>} : memref<8x128xf32, #tpu.memory_space<vmem>>, vector<8x128xf32>,
    %125 = arith.index_cast %c2_i32 : i32 to index
    %c0_58 = arith.constant 0 : index
    %c0_59 = arith.constant 0 : index
    %126 = vector.load %arg9[%125, %c0_58, %c0_59] : memref<4x8x128xf32, #tpu.memory_space<vmem>>, vector<1x8x128xf32>
    %127 = vector.shape_cast %126 : vector<1x8x128xf32> to vector<8x128xf32>
    %128 = vector.shape_cast %122 : vector<8x128xf32> to vector<1x8x128xf32>
    tpu.vector_store %arg9[%125, %c0_58, %c0_59], %128 {strides = array<i32>} : memref<4x8x128xf32, #tpu.memory_space<vmem>>, vector<1x8x128xf32>,
    %c3_i32 = arith.constant 3 : i32
    %129 = arith.index_cast %c3_i32 : i32 to index
    %c0_60 = arith.constant 0 : index
    %c0_61 = arith.constant 0 : index
    %130 = vector.load %arg8[%129, %c0_60, %c0_61] : memref<4x8x512xf32, #tpu.memory_space<vmem>>, vector<1x8x512xf32>
    %131 = vector.shape_cast %130 : vector<1x8x512xf32> to vector<8x512xf32>
    %c0_62 = arith.constant 0 : index
    %c0_63 = arith.constant 0 : index
    %132 = vector.load %arg10[%c0_62, %c0_63] : memref<8x128xf32, #tpu.memory_space<vmem>>, vector<8x128xf32>
    %133 = arith.truncf %132 : vector<8x128xf32> to vector<8x128xbf16>
    %cst_64 = arith.constant dense<0.000000e+00> : vector<8x512xf32>
    %134 = tpu.matmul %133, %11, %cst_64 {dimension_numbers = #tpu.dot_dimension_numbers<[1], [0], [0], [1], [0, 0, 1, 1], [], []>} : vector<8x128xbf16>, vector<128x512xbf16>, vector<8x512xf32> -> vector<8x512xf32>
    %135 = arith.addf %131, %134 : vector<8x512xf32>
    %136 = vector.extract_strided_slice %135 {offsets = [0, 0], sizes = [8, 128], strides = [1, 1]} : vector<8x512xf32> to vector<8x128xf32>
    %137 = arith.negf %136 : vector<8x128xf32>
    %138 = math.exp %137 : vector<8x128xf32>
    %cst_65 = arith.constant 1.000000e+00 : f32
    %139 = vector.broadcast %cst_65 : f32 to vector<8x128xf32>
    %140 = arith.addf %139, %138 : vector<8x128xf32>
    %141 = arith.divf %139, %140 : vector<8x128xf32>
    %142 = vector.extract_strided_slice %135 {offsets = [0, 128], sizes = [8, 128], strides = [1, 1]} : vector<8x512xf32> to vector<8x128xf32>
    %143 = arith.negf %142 : vector<8x128xf32>
    %144 = math.exp %143 : vector<8x128xf32>
    %cst_66 = arith.constant 1.000000e+00 : f32
    %145 = vector.broadcast %cst_66 : f32 to vector<8x128xf32>
    %146 = arith.addf %145, %144 : vector<8x128xf32>
    %147 = arith.divf %145, %146 : vector<8x128xf32>
    %148 = vector.extract_strided_slice %135 {offsets = [0, 256], sizes = [8, 128], strides = [1, 1]} : vector<8x512xf32> to vector<8x128xf32>
    %149 = math.tanh %148 : vector<8x128xf32>
    %150 = vector.extract_strided_slice %135 {offsets = [0, 384], sizes = [8, 128], strides = [1, 1]} : vector<8x512xf32> to vector<8x128xf32>
    %151 = arith.negf %150 : vector<8x128xf32>
    %152 = math.exp %151 : vector<8x128xf32>
    %cst_67 = arith.constant 1.000000e+00 : f32
    %153 = vector.broadcast %cst_67 : f32 to vector<8x128xf32>
    %154 = arith.addf %153, %152 : vector<8x128xf32>
    %155 = arith.divf %153, %154 : vector<8x128xf32>
    %c0_68 = arith.constant 0 : index
    %c0_69 = arith.constant 0 : index
    %156 = vector.load %arg11[%c0_68, %c0_69] : memref<8x128xf32, #tpu.memory_space<vmem>>, vector<8x128xf32>
    %157 = arith.mulf %147, %156 : vector<8x128xf32>
    %158 = arith.mulf %141, %149 : vector<8x128xf32>
    %159 = arith.addf %157, %158 : vector<8x128xf32>
    %160 = math.tanh %159 : vector<8x128xf32>
    %161 = arith.mulf %155, %160 : vector<8x128xf32>
    %c0_70 = arith.constant 0 : index
    %c0_71 = arith.constant 0 : index
    %162 = vector.load %arg11[%c0_70, %c0_71] : memref<8x128xf32, #tpu.memory_space<vmem>>, vector<8x128xf32>
    tpu.vector_store %arg11[%c0_70, %c0_71], %159 {strides = array<i32>} : memref<8x128xf32, #tpu.memory_space<vmem>>, vector<8x128xf32>,
    %c0_72 = arith.constant 0 : index
    %c0_73 = arith.constant 0 : index
    %163 = vector.load %arg10[%c0_72, %c0_73] : memref<8x128xf32, #tpu.memory_space<vmem>>, vector<8x128xf32>
    tpu.vector_store %arg10[%c0_72, %c0_73], %161 {strides = array<i32>} : memref<8x128xf32, #tpu.memory_space<vmem>>, vector<8x128xf32>,
    %164 = arith.index_cast %c3_i32 : i32 to index
    %c0_74 = arith.constant 0 : index
    %c0_75 = arith.constant 0 : index
    %165 = vector.load %arg9[%164, %c0_74, %c0_75] : memref<4x8x128xf32, #tpu.memory_space<vmem>>, vector<1x8x128xf32>
    %166 = vector.shape_cast %165 : vector<1x8x128xf32> to vector<8x128xf32>
    %167 = vector.shape_cast %161 : vector<8x128xf32> to vector<1x8x128xf32>
    tpu.vector_store %arg9[%164, %c0_74, %c0_75], %167 {strides = array<i32>} : memref<4x8x128xf32, #tpu.memory_space<vmem>>, vector<1x8x128xf32>,
    %c4_i32 = arith.constant 4 : i32
    %c0_76 = arith.constant 0 : index
    %c0_77 = arith.constant 0 : index
    %c0_78 = arith.constant 0 : index
    %168 = vector.load %arg9[%c0_76, %c0_77, %c0_78] : memref<4x8x128xf32, #tpu.memory_space<vmem>>, vector<4x8x128xf32>
    %169 = vector.shape_cast %168 : vector<4x8x128xf32> to vector<32x128xf32>
    %170 = arith.truncf %169 : vector<32x128xf32> to vector<32x128xbf16>
    %c0_79 = arith.constant 0 : index
    %c0_80 = arith.constant 0 : index
    %171 = vector.load %arg5[%c0_79, %c0_80] : memref<128x128xbf16, #tpu.memory_space<vmem>>, vector<128x128xbf16>
    %cst_81 = arith.constant dense<0.000000e+00> : vector<32x128xf32>
    %172 = tpu.matmul %170, %171, %cst_81 {dimension_numbers = #tpu.dot_dimension_numbers<[1], [0], [0], [1], [0, 0, 1, 1], [], []>} : vector<32x128xbf16>, vector<128x128xbf16>, vector<32x128xf32> -> vector<32x128xf32>
    %c0_82 = arith.constant 0 : index
    %c0_83 = arith.constant 0 : index
    %173 = vector.load %arg6[%c0_82, %c0_83] : memref<1x128xf32, #tpu.memory_space<vmem>>, vector<1x128xf32>
    %174 = vector.broadcast %173 : vector<1x128xf32> to vector<32x128xf32>
    %175 = arith.addf %172, %174 : vector<32x128xf32>
    %cst_84 = arith.constant dense<0xFF800000> : vector<32xf32>
    %176 = vector.multi_reduction <maximumf>, %175, %cst_84 [1] : vector<32x128xf32> to vector<32xf32>
    %177 = vector.shape_cast %176 : vector<32xf32> to vector<32x1xf32>
    %178 = vector.broadcast %177 : vector<32x1xf32> to vector<32x128xf32>
    %179 = arith.subf %175, %178 : vector<32x128xf32>
    %180 = math.exp %179 : vector<32x128xf32>
    %cst_85 = arith.constant dense<0.000000e+00> : vector<32xf32>
    %181 = vector.multi_reduction <add>, %180, %cst_85 [1] : vector<32x128xf32> to vector<32xf32>
    %182 = vector.shape_cast %181 : vector<32xf32> to vector<32x1xf32>
    %183 = math.log %182 : vector<32x1xf32>
    %184 = vector.broadcast %183 : vector<32x1xf32> to vector<32x128xf32>
    %185 = arith.subf %179, %184 : vector<32x128xf32>
    %c0_86 = arith.constant 0 : index
    %c0_87 = arith.constant 0 : index
    %186 = vector.load %arg7[%c0_86, %c0_87] : memref<32x128xf32, #tpu.memory_space<vmem>>, vector<32x128xf32>
    tpu.vector_store %arg7[%c0_86, %c0_87], %185 {strides = array<i32>} : memref<32x128xf32, #tpu.memory_space<vmem>>, vector<32x128xf32>,
    return
  }
  func.func @transform_0(%arg0: i32) -> (i32, i32) {
    %c0_i32 = arith.constant 0 : i32
    %c0_i32_0 = arith.constant 0 : i32
    return %arg0, %c0_i32 : i32, i32
  }
  func.func @transform_1(%arg0: i32) -> (i32, i32) {
    %c0_i32 = arith.constant 0 : i32
    %c0_i32_0 = arith.constant 0 : i32
    %c0_i32_1 = arith.constant 0 : i32
    return %c0_i32, %c0_i32_0 : i32, i32
  }
  func.func @transform_2(%arg0: i32) -> (i32, i32) {
    %c0_i32 = arith.constant 0 : i32
    %c0_i32_0 = arith.constant 0 : i32
    %c0_i32_1 = arith.constant 0 : i32
    return %c0_i32, %c0_i32_0 : i32, i32
  }
  func.func @transform_3(%arg0: i32) -> (i32, i32) {
    %c0_i32 = arith.constant 0 : i32
    %c0_i32_0 = arith.constant 0 : i32
    %c0_i32_1 = arith.constant 0 : i32
    return %c0_i32, %c0_i32_0 : i32, i32
  }
  func.func @transform_4(%arg0: i32) -> (i32, i32) {
    %c0_i32 = arith.constant 0 : i32
    %c0_i32_0 = arith.constant 0 : i32
    %c0_i32_1 = arith.constant 0 : i32
    return %c0_i32, %c0_i32_0 : i32, i32
  }
  func.func @transform_5(%arg0: i32) -> (i32, i32) {
    %c0_i32 = arith.constant 0 : i32
    %c0_i32_0 = arith.constant 0 : i32
    %c0_i32_1 = arith.constant 0 : i32
    return %c0_i32, %c0_i32_0 : i32, i32
  }
  func.func @transform_6(%arg0: i32) -> (i32, i32) {
    %c0_i32 = arith.constant 0 : i32
    %c0_i32_0 = arith.constant 0 : i32
    return %arg0, %c0_i32 : i32, i32
  }
}

</mosaic_0001>

<llo_original>
// kernel: tpu_custom_call.1
$region0: #{tpu_custom_call.1}
  #allocation0 [shape = 'u32[]', space=smem, size = 0x4, offset = 0x4, fixed_abs, tag = 'smem constant byte address 0x4 - core index']
  #allocation1 [shape = 'u32[144,128]{1,0:T(1,128)}', space=vmem, size = 0x12000, scoped, tag = 'internal scratch']
  #allocation2 [shape = 'f32[4,8,512]{2,1,0:T(8,128)}', space=vmem, size = 0x10000, scoped, tag = 'scratch operand']
  #allocation3 [shape = 'f32[4,8,128]{2,1,0:T(8,128)}', space=vmem, size = 0x4000, scoped, tag = 'scratch operand']
  #allocation4 [shape = 'f32[8,128]{1,0:T(8,128)}', space=vmem, size = 0x1000, scoped, tag = 'scratch operand']
  #allocation5 [shape = 'f32[8,128]{1,0:T(8,128)}', space=vmem, size = 0x1000, scoped, tag = 'scratch operand']
  %s0 = inlined_call_operand.vmem [shape: bf16[64,32], index: 0, kind: input, shape index: {}]
  %s1 = inlined_call_operand.hbm [shape: bf16[32,512], index: 1, kind: input, shape index: {}]
  %s2 = inlined_call_operand.hbm [shape: bf16[128,512], index: 2, kind: input, shape index: {}]
  %s3 = inlined_call_operand.vmem [shape: f32[1,512], index: 3, kind: input, shape index: {}]
  %s4 = inlined_call_operand.hbm [shape: bf16[128,128], index: 4, kind: input, shape index: {}]
  %s5 = inlined_call_operand.vmem [shape: f32[1,128], index: 5, kind: input, shape index: {}]
  %s6 = inlined_call_operand.hbm [shape: f32[64,128], index: 6, kind: output, shape index: {}]
  %s7 = sld [smem:[#allocation0]]
  $region73: #{tpu_custom_call.1} parent=0
    _
  %s9 = ssub.s32 1, %s7
  %s10 = scalar_select 0, %s9, %s7
  $region1: #{tpu_custom_call.1} parent=0
    #allocation6 [shape = 'u8[32768]{0}', space=vmem, size = 0x8000, scoped, tag = 'input window, operand 1, single buffered']
    #allocation7 [shape = 's32[2]{0}', space=sflag, size = 0x8, scoped, tag = 'scoped memory for tpu_custom_call.1']
    #allocation8 [shape = 's32[2]{0}', space=sflag, size = 0x8, scoped, tag = 'scoped memory for tpu_custom_call.1']
    #allocation9 [shape = 'u8[131072]{0}', space=vmem, size = 0x20000, scoped, tag = 'input window, operand 2, single buffered']
    #allocation10 [shape = 's32[1]{0}', space=sflag, size = 0x4, scoped, tag = 'scoped memory for tpu_custom_call.1']
    #allocation11 [shape = 'u8[32768]{0}', space=vmem, size = 0x8000, scoped, tag = 'input window, operand 4, single buffered']
    #allocation12 [shape = 'u8[32768]{0}', space=vmem, size = 0x8000, scoped, tag = 'output window, operand 0']
    %11 = vsyncpa [#allocation7], 0
    %12 = vsyncpa [#allocation10], 0
    %13 = vsyncpa [#allocation8], 0
    %s14 = scalar_lea.sflag [#allocation8], 1
    %15 = vsyncpa %s14, 0
    loop: start=0, step=1, limit=4
    $region2: #{tpu_custom_call.1} parent=1 // loop_pre_header
      _
    $region3: #{tpu_custom_call.1} parent=1 // loop_header
      %s17 = sphi 0, %s21
      %p18 = scmp.ge.s32.totalorder %s17, 4
      %s27 = sphi 0, %s29
      %s30 = sphi 0, %s27
      %s31 = sphi 0, %s30
      %s47 = sphi 0, %s31
      %s51 = sphi 0, %s51
      %s53 = sphi 0, %s51
      %s54 = sphi 0, %s53
      %s68 = sphi 0, %s54
      %s72 = sphi 0, %s72
      %s74 = sphi 0, %s72
      %s75 = sphi 0, %s74
      %s89 = sphi 0, %s75
      %s93 = sphi 0, %s93
      %s95 = sphi 0, %s93
      %s96 = sphi 0, %s95
      %s110 = sphi 0, %s96
      %s114 = sphi 0, %s114
      %s116 = sphi 0, %s114
      %s117 = sphi 0, %s116
      %s131 = sphi 0, %s117
      %s135 = sphi 0, %s135
      %s137 = sphi 0, %s135
      %s138 = sphi 0, %s137
      %s152 = sphi 0, %s138
      %s158 = sphi 0, %s160
      %s161 = sphi 0, %s158
      %s162 = sphi 0, %s161
      %s178 = sphi 0, %s162
    $region4: #{tpu_custom_call.1} parent=1 // loop_header_branch
      %20 = sbr.rel (%p18) target = $region8
    $region5: #{tpu_custom_call.1} parent=1 // loop_body
      %s22 = ssub.s32 %s17, 1
      %s23 = ssub.s32 %s17, 2
      %s24 = sadd.s32 %s17, 1
      %s25 = ssub.s32 %s17, %s24
      %p26 = scmp.eq.s32.totalorder %s25, 0
      %s28 = sadd.s32 %s27, 1
      %s29 = scalar_select %p26, %s27, %s28
      %p32 = pneg %p26
      %p33 = scmp.eq.s32.totalorder %s17, 1
      %p34 = por %p32, %p33
      %p35 = scmp.ne.s32.totalorder %s27, %s30
      %p36 = scmp.eq.s32.totalorder %s17, 0
      %p37 = por %p35, %p36
      %p38 = scmp.ne.s32.totalorder %s27, %s30
      %p39 = scmp.eq.s32.totalorder %s22, 1
      %p40 = por %p38, %p39
      %p41 = scmp.ne.s32.totalorder %s30, %s31
      %p42 = scmp.eq.s32.totalorder %s22, 0
      %p43 = por %p41, %p42
      %p44 = scmp.ne.s32.totalorder %s30, %s31
      %p45 = scmp.eq.s32.totalorder %s23, 1
      %p46 = por %p44, %p45
      %p48 = scmp.ne.s32.totalorder %s31, %s47
      %p49 = scmp.eq.s32.totalorder %s23, 0
      %p50 = por %p48, %p49
      %s52 = sadd.s32 %s51, 1
      %p55 = scmp.eq.s32.totalorder %s17, 1
      %p56 = scmp.ne.s32.totalorder %s51, %s53
      %p57 = scmp.eq.s32.totalorder %s17, 0
      %p58 = por %p56, %p57
      %p59 = scmp.ne.s32.totalorder %s51, %s53
      %p60 = scmp.eq.s32.totalorder %s22, 1
      %p61 = por %p59, %p60
      %p62 = scmp.ne.s32.totalorder %s53, %s54
      %p63 = scmp.eq.s32.totalorder %s22, 0
      %p64 = por %p62, %p63
      %p65 = scmp.ne.s32.totalorder %s53, %s54
      %p66 = scmp.eq.s32.totalorder %s23, 1
      %p67 = por %p65, %p66
      %p69 = scmp.ne.s32.totalorder %s54, %s68
      %p70 = scmp.eq.s32.totalorder %s23, 0
      %p71 = por %p69, %p70
      %s73 = sadd.s32 %s72, 1
      %p76 = scmp.eq.s32.totalorder %s17, 1
      %p77 = scmp.ne.s32.totalorder %s72, %s74
      %p78 = scmp.eq.s32.totalorder %s17, 0
      %p79 = por %p77, %p78
      %p80 = scmp.ne.s32.totalorder %s72, %s74
      %p81 = scmp.eq.s32.totalorder %s22, 1
      %p82 = por %p80, %p81
      %p83 = scmp.ne.s32.totalorder %s74, %s75
      %p84 = scmp.eq.s32.totalorder %s22, 0
      %p85 = por %p83, %p84
      %p86 = scmp.ne.s32.totalorder %s74, %s75
      %p87 = scmp.eq.s32.totalorder %s23, 1
      %p88 = por %p86, %p87
      %p90 = scmp.ne.s32.totalorder %s75, %s89
      %p91 = scmp.eq.s32.totalorder %s23, 0
      %p92 = por %p90, %p91
      %s94 = sadd.s32 %s93, 1
      %p97 = scmp.eq.s32.totalorder %s17, 1
      %p98 = scmp.ne.s32.totalorder %s93, %s95
      %p99 = scmp.eq.s32.totalorder %s17, 0
      %p100 = por %p98, %p99
      %p101 = scmp.ne.s32.totalorder %s93, %s95
      %p102 = scmp.eq.s32.totalorder %s22, 1
      %p103 = por %p101, %p102
      %p104 = scmp.ne.s32.totalorder %s95, %s96
      %p105 = scmp.eq.s32.totalorder %s22, 0
      %p106 = por %p104, %p105
      %p107 = scmp.ne.s32.totalorder %s95, %s96
      %p108 = scmp.eq.s32.totalorder %s23, 1
      %p109 = por %p107, %p108
      %p111 = scmp.ne.s32.totalorder %s96, %s110
      %p112 = scmp.eq.s32.totalorder %s23, 0
      %p113 = por %p111, %p112
      %s115 = sadd.s32 %s114, 1
      %p118 = scmp.eq.s32.totalorder %s17, 1
      %p119 = scmp.ne.s32.totalorder %s114, %s116
      %p120 = scmp.eq.s32.totalorder %s17, 0
      %p121 = por %p119, %p120
      %p122 = scmp.ne.s32.totalorder %s114, %s116
      %p123 = scmp.eq.s32.totalorder %s22, 1
      %p124 = por %p122, %p123
      %p125 = scmp.ne.s32.totalorder %s116, %s117
      %p126 = scmp.eq.s32.totalorder %s22, 0
      %p127 = por %p125, %p126
      %p128 = scmp.ne.s32.totalorder %s116, %s117
      %p129 = scmp.eq.s32.totalorder %s23, 1
      %p130 = por %p128, %p129
      %p132 = scmp.ne.s32.totalorder %s117, %s131
      %p133 = scmp.eq.s32.totalorder %s23, 0
      %p134 = por %p132, %p133
      %s136 = sadd.s32 %s135, 1
      %p139 = scmp.eq.s32.totalorder %s17, 1
      %p140 = scmp.ne.s32.totalorder %s135, %s137
      %p141 = scmp.eq.s32.totalorder %s17, 0
      %p142 = por %p140, %p141
      %p143 = scmp.ne.s32.totalorder %s135, %s137
      %p144 = scmp.eq.s32.totalorder %s22, 1
      %p145 = por %p143, %p144
      %p146 = scmp.ne.s32.totalorder %s137, %s138
      %p147 = scmp.eq.s32.totalorder %s22, 0
      %p148 = por %p146, %p147
      %p149 = scmp.ne.s32.totalorder %s137, %s138
      %p150 = scmp.eq.s32.totalorder %s23, 1
      %p151 = por %p149, %p150
      %p153 = scmp.ne.s32.totalorder %s138, %s152
      %p154 = scmp.eq.s32.totalorder %s23, 0
      %p155 = por %p153, %p154
      %s156 = ssub.s32 %s17, %s24
      %p157 = scmp.eq.s32.totalorder %s156, 0
      %s159 = sadd.s32 %s158, 1
      %s160 = scalar_select %p157, %s158, %s159
      %p163 = pneg %p157
      %p164 = scmp.eq.s32.totalorder %s17, 1
      %p165 = por %p163, %p164
      %p166 = scmp.ne.s32.totalorder %s158, %s161
      %p167 = scmp.eq.s32.totalorder %s17, 0
      %p168 = por %p166, %p167
      %p169 = scmp.ne.s32.totalorder %s158, %s161
      %p170 = scmp.eq.s32.totalorder %s22, 1
      %p171 = por %p169, %p170
      %p172 = scmp.ne.s32.totalorder %s161, %s162
      %p173 = scmp.eq.s32.totalorder %s22, 0
      %p174 = por %p172, %p173
      %p175 = scmp.ne.s32.totalorder %s161, %s162
      %p176 = scmp.eq.s32.totalorder %s23, 1
      %p177 = por %p175, %p176
      %p179 = scmp.ne.s32.totalorder %s162, %s178
      %p180 = scmp.eq.s32.totalorder %s23, 0
      %p181 = por %p179, %p180
      %p182 = scmp.le.s32.totalorder 1, %s17
      %p183 = scmp.lt.s32.totalorder %s17, 3
      %p184 = pnand %p182, %p183
      %p185 = pneg %p184
      // Predicated region
      $region9: #{tpu_custom_call.1} parent=5 // pred_check
        _
      $region10: #{tpu_custom_call.1} parent=5 // pred_check_branch
        %187 = sbr.rel (%p184) target = $region12
      $region11: #{tpu_custom_call.1} parent=5 // pred_region
        %s188 = ssub.s32 %s17, 1
        // Predicated region
        $region13: #{tpu_custom_call.1} parent=11 // pred_check
          %p189 = pneg %p64
        $region14: #{tpu_custom_call.1} parent=11 // pred_check_branch
          %191 = sbr.rel (%p189) target = $region16
        $region15: #{tpu_custom_call.1} parent=11 // pred_region
          %s193 = ssub.s32 1024, 1024
          %194 = vsyncadd [#allocation7], %s193
          %s195 = sshll.u32 [#allocation6], 4
          %s196 = int_to_ptr.vmem [resolvable:$true] %s195
          %201 = dma.hbm_to_vmem [thread:$0]  %s1, 1024, %s196, [#allocation7], 256, 256, 16
        $region16: #{tpu_custom_call.1} parent=11 // pred_fallthru
          _
        // Predicated region
        $region17: #{tpu_custom_call.1} parent=11 // pred_check
          %p202 = pneg %p85
        $region18: #{tpu_custom_call.1} parent=11 // pred_check_branch
          %204 = sbr.rel (%p202) target = $region20
        $region19: #{tpu_custom_call.1} parent=11 // pred_region
          %s206 = ssub.s32 4096, 4096
          %207 = vsyncadd [#allocation10], %s206
          %s208 = sshll.u32 [#allocation9], 4
          %s209 = int_to_ptr.vmem [resolvable:$true] %s208
          %214 = dma.hbm_to_vmem [thread:$0]  %s2, 4096, %s209, [#allocation10], 256, 256, 16
        $region20: #{tpu_custom_call.1} parent=11 // pred_fallthru
          _
        // Predicated region
        $region21: #{tpu_custom_call.1} parent=11 // pred_check
          %p215 = pneg %p106
        $region22: #{tpu_custom_call.1} parent=11 // pred_check_branch
          %217 = sbr.rel (%p215) target = $region24
        $region23: #{tpu_custom_call.1} parent=11 // pred_region
          _
        $region24: #{tpu_custom_call.1} parent=11 // pred_fallthru
          _
        // Predicated region
        $region25: #{tpu_custom_call.1} parent=11 // pred_check
          %p218 = pneg %p127
        $region26: #{tpu_custom_call.1} parent=11 // pred_check_branch
          %220 = sbr.rel (%p218) target = $region28
        $region27: #{tpu_custom_call.1} parent=11 // pred_region
          %s222 = ssub.s32 1024, 1024
          %223 = vsyncadd [#allocation10], %s222
          %s224 = sshll.u32 [#allocation11], 4
          %s225 = int_to_ptr.vmem [resolvable:$true] %s224
          %230 = dma.hbm_to_vmem [thread:$0]  %s4, 1024, %s225, [#allocation10], 64, 64, 4
        $region28: #{tpu_custom_call.1} parent=11 // pred_fallthru
          _
        // Predicated region
        $region29: #{tpu_custom_call.1} parent=11 // pred_check
          %p231 = pneg %p148
        $region30: #{tpu_custom_call.1} parent=11 // pred_check_branch
          %233 = sbr.rel (%p231) target = $region32
        $region31: #{tpu_custom_call.1} parent=11 // pred_region
          _
        $region32: #{tpu_custom_call.1} parent=11 // pred_fallthru
          _
      $region12: #{tpu_custom_call.1} parent=5 // pred_fallthru
        _
      %p234 = scmp.lt.s32.totalorder %s17, 2
      // Predicated region
      $region33: #{tpu_custom_call.1} parent=5 // pred_check
        %p235 = pneg %p234
      $region34: #{tpu_custom_call.1} parent=5 // pred_check_branch
        %237 = sbr.rel (%p235) target = $region36
      $region35: #{tpu_custom_call.1} parent=5 // pred_region
        // Predicated region
        $region37: #{tpu_custom_call.1} parent=35 // pred_check
          %p238 = pneg %p37
        $region38: #{tpu_custom_call.1} parent=35 // pred_check_branch
          %240 = sbr.rel (%p238) target = $region40
        $region39: #{tpu_custom_call.1} parent=35 // pred_region
          %s241 = smul.u32 4, %s17
          %p242 = scmp.lt.s32.totalorder %s241, 7
          %s243 = scalar_select %p242, %s241, 7
          %s244 = smul.addr %s243, 4
          %s245 = scalar_lea.vmem %s0, %s244
          %s246 = smul.u32 4, %s17
        $region40: #{tpu_custom_call.1} parent=35 // pred_fallthru
          _
      $region36: #{tpu_custom_call.1} parent=5 // pred_fallthru
        _
      %p247 = scmp.le.s32.totalorder 1, %s17
      %p248 = scmp.lt.s32.totalorder %s17, 3
      %p249 = pnand %p247, %p248
      %p250 = pneg %p249
      // Predicated region
      $region41: #{tpu_custom_call.1} parent=5 // pred_check
        _
      $region42: #{tpu_custom_call.1} parent=5 // pred_check_branch
        %252 = sbr.rel (%p249) target = $region44
      $region43: #{tpu_custom_call.1} parent=5 // pred_region
        %s253 = ssub.s32 %s17, 1
        // Predicated region
        $region45: #{tpu_custom_call.1} parent=43 // pred_check
          %p254 = pneg %p64
        $region46: #{tpu_custom_call.1} parent=43 // pred_check_branch
          %256 = sbr.rel (%p254) target = $region48
        $region47: #{tpu_custom_call.1} parent=43 // pred_region
          %257 = dma.done [#allocation7], 1024
        $region48: #{tpu_custom_call.1} parent=43 // pred_fallthru
          _
        // Predicated region
        $region49: #{tpu_custom_call.1} parent=43 // pred_check
          %p258 = pneg %p85
        $region50: #{tpu_custom_call.1} parent=43 // pred_check_branch
          %260 = sbr.rel (%p258) target = $region52
        $region51: #{tpu_custom_call.1} parent=43 // pred_region
          %261 = dma.done [#allocation10], 4096
        $region52: #{tpu_custom_call.1} parent=43 // pred_fallthru
          _
        // Predicated region
        $region53: #{tpu_custom_call.1} parent=43 // pred_check
          %p262 = pneg %p127
        $region54: #{tpu_custom_call.1} parent=43 // pred_check_branch
          %264 = sbr.rel (%p262) target = $region56
        $region55: #{tpu_custom_call.1} parent=43 // pred_region
          %265 = dma.done [#allocation10], 1024
        $region56: #{tpu_custom_call.1} parent=43 // pred_fallthru
          _
        %s266 = smul.u32 4, %s22
        %p267 = scmp.lt.s32.totalorder %s266, 7
        %s268 = scalar_select %p267, %s266, 7
        %s269 = smul.addr %s268, 4
        %s270 = scalar_lea.vmem %s0, %s269
        %p271 = pneg %p43
        %p272 = pneg %p40
        %p273 = pneg %p64
        %p274 = pneg %p61
        %p275 = pneg %p85
        %p276 = pneg %p82
        %p277 = pneg %p106
        %p278 = pneg %p103
        %p279 = pneg %p127
        %p280 = pneg %p124
        %p281 = pneg %p148
        %p282 = pneg %p145
        %p283 = pneg %p174
        %p284 = pneg %p171
        %s285 = sand.u32 %s161, 1
        %s286 = scalar_lea.sflag [#allocation8], %s285
        %s287 = sand.u32 %s161, 1
        %s288 = smul.addr %s287, 32
        %s289 = scalar_lea.vmem [#allocation12], %s288
        %s290 = smul.u32 4, %s22
        %p291 = scmp.lt.s32.totalorder %s290, 7
        %s292 = scalar_select %p291, %s290, 7
        %s293 = smul.addr %s292, 4
        %s294 = scalar_lea.vmem %s0, %s293
        %s295 = smul.u32 4, %s22
        %s296 = smul.u32 4, %s22
        %p298 = scmp.eq.s32.totalorder %s22, 0
        // Predicated region
        $region57: #{tpu_custom_call.1} parent=43 // pred_check
          %p299 = pneg %p298
        $region58: #{tpu_custom_call.1} parent=43 // pred_check_branch
          %301 = sbr.rel (%p299) target = $region60
        $region59: #{tpu_custom_call.1} parent=43 // pred_region
          %302 = vst [vmem:[#allocation4] sm:$0xff] 0.0
          %303 = vst [vmem:[#allocation5] sm:$0xff] 0.0
        $region60: #{tpu_custom_call.1} parent=43 // pred_fallthru
          _
        %v304 = vld [vmem:[%s294] sm:$0xf]
        %v305 = vld [vmem:[%s294 + $0x4] sm:$0xf]
        %v306 = vld [vmem:[%s294 + $0x8] sm:$0xf]
        %v307 = vld [vmem:[%s294 + $0xc] sm:$0xf]
        %v308 = vld [vmem:[#allocation6] sm:$0xff]
        %v309 = vld [vmem:[#allocation6 + $0x8] sm:$0xff]
        %v310 = vld [vmem:[#allocation6 + $0x10] sm:$0xff]
        %v311 = vld [vmem:[#allocation6 + $0x18] sm:$0xff]
        %v312 = vld [vmem:[#allocation6 + $0x20] sm:$0xff]
        %v313 = vld [vmem:[#allocation6 + $0x28] sm:$0xff]
        %v314 = vld [vmem:[#allocation6 + $0x30] sm:$0xff]
        %v315 = vld [vmem:[#allocation6 + $0x38] sm:$0xff]
        %v316 = vld [vmem:[%s3] sm:$0xf]
        %v318 = vlaneseq
        %v319 = vshrl.u32 %v318, 7
        %v320 = vsub.s32 0, %v319
        %v321 = vrot.slane %v316, %v320
        %v322 = vlaneseq
        %v323 = vshrl.u32 %v322, 7
        %v324 = vsub.s32 1, %v323
        %v325 = vrot.slane %v316, %v324
        %v326 = vlaneseq
        %v327 = vshrl.u32 %v326, 7
        %v328 = vsub.s32 2, %v327
        %v329 = vrot.slane %v316, %v328
        %v330 = vlaneseq
        %v331 = vshrl.u32 %v330, 7
        %v332 = vsub.s32 3, %v331
        %v333 = vrot.slane %v316, %v332
        %v342 = vunpack.c.l.b16 %v304
        %v343 = vunpack.c.l.b16 %v305
        %v344 = vunpack.c.l.b16 %v306
        %v345 = vunpack.c.l.b16 %v307
        %v346 = vpack.c.b16 %v343, %v342
        %v347 = vpack.c.b16 %v345, %v344
        %v356 = vunpack.c.l.b16 %v308
        %v357 = vunpack.c.h.b16 %v308
        %v358 = vunpack.c.l.b16 %v309
        %v359 = vunpack.c.h.b16 %v309
        %v360 = vunpack.c.l.b16 %v310
        %v361 = vunpack.c.h.b16 %v310
        %v362 = vunpack.c.l.b16 %v311
        %v363 = vunpack.c.h.b16 %v311
        %v364 = vunpack.c.l.b16 %v312
        %v365 = vunpack.c.h.b16 %v312
        %v366 = vunpack.c.l.b16 %v313
        %v367 = vunpack.c.h.b16 %v313
        %v368 = vunpack.c.l.b16 %v314
        %v369 = vunpack.c.h.b16 %v314
        %v370 = vunpack.c.l.b16 %v315
        %v371 = vunpack.c.h.b16 %v315
        %v372 = vpack.c.b16 %v360, %v356
        %v373 = vpack.c.b16 %v361, %v357
        %v374 = vpack.c.b16 %v362, %v358
        %v375 = vpack.c.b16 %v363, %v359
        %v376 = vpack.c.b16 %v368, %v364
        %v377 = vpack.c.b16 %v369, %v365
        %v378 = vpack.c.b16 %v370, %v366
        %v379 = vpack.c.b16 %v371, %v367
        %vm388 = vcmask 261120
        %v390 = vsel %vm388, %v346, 0
        %v393 = vsel %vm388, %v347, 0
        %395 = vmatprep.subr.bf16.mxu0 %v373
        %396 = vmatpush1.bf16.msra.mxu0 %v372
        %397 = vmatprep.subr.bf16.mxu0 %v377
        %398 = vmatpush1.bf16.msra.mxu0 %v376
        %399 = vmatprep.subr.bf16.mxu0 0
        %400 = vmatpush1.bf16.msra.mxu0 0
        %401 = vmatprep.subr.bf16.mxu0 0
        %402 = vmatpush1.bf16.msra.mxu0 0
        %403 = vmatprep.subr.bf16.mxu0 0
        %404 = vmatpush1.bf16.msra.mxu0 0
        %405 = vmatprep.subr.bf16.mxu0 0
        %406 = vmatpush1.bf16.msra.mxu0 0
        %407 = vmatprep.subr.bf16.mxu0 0
        %408 = vmatpush1.bf16.msra.mxu0 0
        %409 = vmatprep.subr.bf16.mxu0 0
        %410 = vmatpush1.bf16.msra.mxu0 0
        %411 = vmatprep.subr.bf16.mxu0 0
        %412 = vmatpush1.bf16.msra.mxu0 0
        %413 = vmatprep.subr.bf16.mxu0 0
        %414 = vmatpush1.bf16.msra.mxu0 0
        %415 = vmatprep.subr.bf16.mxu0 0
        %416 = vmatpush1.bf16.msra.mxu0 0
        %417 = vmatprep.subr.bf16.mxu0 0
        %418 = vmatpush1.bf16.msra.mxu0 0
        %419 = vmatprep.subr.bf16.mxu0 0
        %420 = vmatpush1.bf16.msra.mxu0 0
        %421 = vmatprep.subr.bf16.mxu0 0
        %422 = vmatpush1.bf16.msra.mxu0 0
        %423 = vmatprep.subr.bf16.mxu0 0
        %424 = vmatpush1.bf16.msra.mxu0 0
        %425 = vmatprep.subr.bf16.mxu0 0
        %426 = vmatpush1.bf16.msra.mxu0 0
        %427 = vmatprep.mubr.bf16.mxu0 0
        %428 = vmatmul.mubr.bf16.gmra.mrb[0].mxu0 %v390
        %v429 = vpop.f32.mrb[0].mxu0
        %v430 = vadd.f32 %v321, %v429
        %v431 = vpop.f32.mrb[0].mxu0
        %v432 = vadd.f32 %v325, %v431
        %v433 = vpop.f32.mrb[0].mxu0
        %v434 = vadd.f32 %v321, %v433
        %v435 = vpop.f32.mrb[0].mxu0
        %v436 = vadd.f32 %v325, %v435
        %437 = vmatprep.mubr.bf16.mxu0 0
        %438 = vmatmul.mubr.bf16.gmra.mrb[0].mxu0 %v393
        %v439 = vpop.f32.mrb[0].mxu0
        %v440 = vadd.f32 %v321, %v439
        %v441 = vpop.f32.mrb[0].mxu0
        %v442 = vadd.f32 %v325, %v441
        %v443 = vpop.f32.mrb[0].mxu0
        %v444 = vadd.f32 %v321, %v443
        %v445 = vpop.f32.mrb[0].mxu0
        %v446 = vadd.f32 %v325, %v445
        %447 = vdwg.mxu0
        %448 = vmatprep.subr.bf16.mxu0 %v375
        %449 = vmatpush1.bf16.msra.mxu0 %v374
        %450 = vmatprep.subr.bf16.mxu0 %v379
        %451 = vmatpush1.bf16.msra.mxu0 %v378
        %452 = vmatprep.subr.bf16.mxu0 0
        %453 = vmatpush1.bf16.msra.mxu0 0
        %454 = vmatprep.subr.bf16.mxu0 0
        %455 = vmatpush1.bf16.msra.mxu0 0
        %456 = vmatprep.subr.bf16.mxu0 0
        %457 = vmatpush1.bf16.msra.mxu0 0
        %458 = vmatprep.subr.bf16.mxu0 0
        %459 = vmatpush1.bf16.msra.mxu0 0
        %460 = vmatprep.subr.bf16.mxu0 0
        %461 = vmatpush1.bf16.msra.mxu0 0
        %462 = vmatprep.subr.bf16.mxu0 0
        %463 = vmatpush1.bf16.msra.mxu0 0
        %464 = vmatprep.subr.bf16.mxu0 0
        %465 = vmatpush1.bf16.msra.mxu0 0
        %466 = vmatprep.subr.bf16.mxu0 0
        %467 = vmatpush1.bf16.msra.mxu0 0
        %468 = vmatprep.subr.bf16.mxu0 0
        %469 = vmatpush1.bf16.msra.mxu0 0
        %470 = vmatprep.subr.bf16.mxu0 0
        %471 = vmatpush1.bf16.msra.mxu0 0
        %472 = vmatprep.subr.bf16.mxu0 0
        %473 = vmatpush1.bf16.msra.mxu0 0
        %474 = vmatprep.subr.bf16.mxu0 0
        %475 = vmatpush1.bf16.msra.mxu0 0
        %476 = vmatprep.subr.bf16.mxu0 0
        %477 = vmatpush1.bf16.msra.mxu0 0
        %478 = vmatprep.subr.bf16.mxu0 0
        %479 = vmatpush1.bf16.msra.mxu0 0
        %480 = vmatprep.mubr.bf16.mxu0 0
        %481 = vmatmul.mubr.bf16.gmra.mrb[0].mxu0 %v390
        %v482 = vpop.f32.mrb[0].mxu0
        %v483 = vadd.f32 %v329, %v482
        %v484 = vpop.f32.mrb[0].mxu0
        %v485 = vadd.f32 %v333, %v484
        %v486 = vpop.f32.mrb[0].mxu0
        %v487 = vadd.f32 %v329, %v486
        %v488 = vpop.f32.mrb[0].mxu0
        %v489 = vadd.f32 %v333, %v488
        %490 = vmatprep.mubr.bf16.mxu0 0
        %491 = vmatmul.mubr.bf16.gmra.mrb[0].mxu0 %v393
        %v492 = vpop.f32.mrb[0].mxu0
        %v493 = vadd.f32 %v329, %v492
        %v494 = vpop.f32.mrb[0].mxu0
        %v495 = vadd.f32 %v333, %v494
        %v496 = vpop.f32.mrb[0].mxu0
        %v497 = vadd.f32 %v329, %v496
        %v498 = vpop.f32.mrb[0].mxu0
        %v499 = vadd.f32 %v333, %v498
        %500 = vdwg.mxu0
        %501 = vst [vmem:[#allocation2] sm:$0xff] %v430
        %502 = vst [vmem:[#allocation2 + $0x8] sm:$0xff] %v432
        %503 = vst [vmem:[#allocation2 + $0x10] sm:$0xff] %v483
        %504 = vst [vmem:[#allocation2 + $0x18] sm:$0xff] %v485
        %505 = vst [vmem:[#allocation2 + $0x20] sm:$0xff] %v434
        %506 = vst [vmem:[#allocation2 + $0x28] sm:$0xff] %v436
        %507 = vst [vmem:[#allocation2 + $0x30] sm:$0xff] %v487
        %508 = vst [vmem:[#allocation2 + $0x38] sm:$0xff] %v489
        %509 = vst [vmem:[#allocation2 + $0x40] sm:$0xff] %v440
        %510 = vst [vmem:[#allocation2 + $0x48] sm:$0xff] %v442
        %511 = vst [vmem:[#allocation2 + $0x50] sm:$0xff] %v493
        %512 = vst [vmem:[#allocation2 + $0x58] sm:$0xff] %v495
        %513 = vst [vmem:[#allocation2 + $0x60] sm:$0xff] %v444
        %514 = vst [vmem:[#allocation2 + $0x68] sm:$0xff] %v446
        %515 = vst [vmem:[#allocation2 + $0x70] sm:$0xff] %v497
        %516 = vst [vmem:[#allocation2 + $0x78] sm:$0xff] %v499
        %v517 = vld [vmem:[#allocation9] sm:$0xff]
        %v518 = vld [vmem:[#allocation9 + $0x8] sm:$0xff]
        %v519 = vld [vmem:[#allocation9 + $0x10] sm:$0xff]
        %v520 = vld [vmem:[#allocation9 + $0x18] sm:$0xff]
        %v521 = vld [vmem:[#allocation9 + $0x20] sm:$0xff]
        %v522 = vld [vmem:[#allocation9 + $0x28] sm:$0xff]
        %v523 = vld [vmem:[#allocation9 + $0x30] sm:$0xff]
        %v524 = vld [vmem:[#allocation9 + $0x38] sm:$0xff]
        %v525 = vld [vmem:[#allocation9 + $0x40] sm:$0xff]
        %v526 = vld [vmem:[#allocation9 + $0x48] sm:$0xff]
        %v527 = vld [vmem:[#allocation9 + $0x50] sm:$0xff]
        %v528 = vld [vmem:[#allocation9 + $0x58] sm:$0xff]
        %v529 = vld [vmem:[#allocation9 + $0x60] sm:$0xff]
        %v530 = vld [vmem:[#allocation9 + $0x68] sm:$0xff]
        %v531 = vld [vmem:[#allocation9 + $0x70] sm:$0xff]
        %v532 = vld [vmem:[#allocation9 + $0x78] sm:$0xff]
        %v533 = vld [vmem:[#allocation9 + $0x80] sm:$0xff]
        %v534 = vld [vmem:[#allocation9 + $0x88] sm:$0xff]
        %v535 = vld [vmem:[#allocation9 + $0x90] sm:$0xff]
        %v536 = vld [vmem:[#allocation9 + $0x98] sm:$0xff]
        %v537 = vld [vmem:[#allocation9 + $0xa0] sm:$0xff]
        %v538 = vld [vmem:[#allocation9 + $0xa8] sm:$0xff]
        %v539 = vld [vmem:[#allocation9 + $0xb0] sm:$0xff]
        %v540 = vld [vmem:[#allocation9 + $0xb8] sm:$0xff]
        %v541 = vld [vmem:[#allocation9 + $0xc0] sm:$0xff]
        %v542 = vld [vmem:[#allocation9 + $0xc8] sm:$0xff]
        %v543 = vld [vmem:[#allocation9 + $0xd0] sm:$0xff]
        %v544 = vld [vmem:[#allocation9 + $0xd8] sm:$0xff]
        %v545 = vld [vmem:[#allocation9 + $0xe0] sm:$0xff]
        %v546 = vld [vmem:[#allocation9 + $0xe8] sm:$0xff]
        %v547 = vld [vmem:[#allocation9 + $0xf0] sm:$0xff]
        %v548 = vld [vmem:[#allocation9 + $0xf8] sm:$0xff]
        %v549 = vld [vmem:[#allocation2] sm:$0xff]
        %v550 = vld [vmem:[#allocation2 + $0x8] sm:$0xff]
        %v551 = vld [vmem:[#allocation2 + $0x10] sm:$0xff]
        %v552 = vld [vmem:[#allocation2 + $0x18] sm:$0xff]
        %v553 = vld [vmem:[#allocation4] sm:$0xff]
        %v554 = vpack.c.bf16 %v553, %v553
        %v587 = vunpack.c.l.b16 %v517
        %v588 = vunpack.c.h.b16 %v517
        %v589 = vunpack.c.l.b16 %v518
        %v590 = vunpack.c.h.b16 %v518
        %v591 = vunpack.c.l.b16 %v519
        %v592 = vunpack.c.h.b16 %v519
        %v593 = vunpack.c.l.b16 %v520
        %v594 = vunpack.c.h.b16 %v520
        %v595 = vunpack.c.l.b16 %v521
        %v596 = vunpack.c.h.b16 %v521
        %v597 = vunpack.c.l.b16 %v522
        %v598 = vunpack.c.h.b16 %v522
        %v599 = vunpack.c.l.b16 %v523
        %v600 = vunpack.c.h.b16 %v523
        %v601 = vunpack.c.l.b16 %v524
        %v602 = vunpack.c.h.b16 %v524
        %v603 = vunpack.c.l.b16 %v525
        %v604 = vunpack.c.h.b16 %v525
        %v605 = vunpack.c.l.b16 %v526
        %v606 = vunpack.c.h.b16 %v526
        %v607 = vunpack.c.l.b16 %v527
        %v608 = vunpack.c.h.b16 %v527
        %v609 = vunpack.c.l.b16 %v528
        %v610 = vunpack.c.h.b16 %v528
        %v611 = vunpack.c.l.b16 %v529
        %v612 = vunpack.c.h.b16 %v529
        %v613 = vunpack.c.l.b16 %v530
        %v614 = vunpack.c.h.b16 %v530
        %v615 = vunpack.c.l.b16 %v531
        %v616 = vunpack.c.h.b16 %v531
        %v617 = vunpack.c.l.b16 %v532
        %v618 = vunpack.c.h.b16 %v532
        %v619 = vunpack.c.l.b16 %v533
        %v620 = vunpack.c.h.b16 %v533
        %v621 = vunpack.c.l.b16 %v534
        %v622 = vunpack.c.h.b16 %v534
        %v623 = vunpack.c.l.b16 %v535
        %v624 = vunpack.c.h.b16 %v535
        %v625 = vunpack.c.l.b16 %v536
        %v626 = vunpack.c.h.b16 %v536
        %v627 = vunpack.c.l.b16 %v537
        %v628 = vunpack.c.h.b16 %v537
        %v629 = vunpack.c.l.b16 %v538
        %v630 = vunpack.c.h.b16 %v538
        %v631 = vunpack.c.l.b16 %v539
        %v632 = vunpack.c.h.b16 %v539
        %v633 = vunpack.c.l.b16 %v540
        %v634 = vunpack.c.h.b16 %v540
        %v635 = vunpack.c.l.b16 %v541
        %v636 = vunpack.c.h.b16 %v541
        %v637 = vunpack.c.l.b16 %v542
        %v638 = vunpack.c.h.b16 %v542
        %v639 = vunpack.c.l.b16 %v543
        %v640 = vunpack.c.h.b16 %v543
        %v641 = vunpack.c.l.b16 %v544
        %v642 = vunpack.c.h.b16 %v544
        %v643 = vunpack.c.l.b16 %v545
        %v644 = vunpack.c.h.b16 %v545
        %v645 = vunpack.c.l.b16 %v546
        %v646 = vunpack.c.h.b16 %v546
        %v647 = vunpack.c.l.b16 %v547
        %v648 = vunpack.c.h.b16 %v547
        %v649 = vunpack.c.l.b16 %v548
        %v650 = vunpack.c.h.b16 %v548
        %v651 = vpack.c.b16 %v591, %v587
        %v652 = vpack.c.b16 %v592, %v588
        %v653 = vpack.c.b16 %v593, %v589
        %v654 = vpack.c.b16 %v594, %v590
        %v655 = vpack.c.b16 %v599, %v595
        %v656 = vpack.c.b16 %v600, %v596
        %v657 = vpack.c.b16 %v601, %v597
        %v658 = vpack.c.b16 %v602, %v598
        %v659 = vpack.c.b16 %v607, %v603
        %v660 = vpack.c.b16 %v608, %v604
        %v661 = vpack.c.b16 %v609, %v605
        %v662 = vpack.c.b16 %v610, %v606
        %v663 = vpack.c.b16 %v615, %v611
        %v664 = vpack.c.b16 %v616, %v612
        %v665 = vpack.c.b16 %v617, %v613
        %v666 = vpack.c.b16 %v618, %v614
        %v667 = vpack.c.b16 %v623, %v619
        %v668 = vpack.c.b16 %v624, %v620
        %v669 = vpack.c.b16 %v625, %v621
        %v670 = vpack.c.b16 %v626, %v622
        %v671 = vpack.c.b16 %v631, %v627
        %v672 = vpack.c.b16 %v632, %v628
        %v673 = vpack.c.b16 %v633, %v629
        %v674 = vpack.c.b16 %v634, %v630
        %v675 = vpack.c.b16 %v639, %v635
        %v676 = vpack.c.b16 %v640, %v636
        %v677 = vpack.c.b16 %v641, %v637
        %v678 = vpack.c.b16 %v642, %v638
        %v679 = vpack.c.b16 %v647, %v643
        %v680 = vpack.c.b16 %v648, %v644
        %v681 = vpack.c.b16 %v649, %v645
        %v682 = vpack.c.b16 %v650, %v646
        %715 = vmatprep.subr.bf16.mxu0 %v652
        %716 = vmatpush1.bf16.msra.mxu0 %v651
        %717 = vmatprep.subr.bf16.mxu0 %v656
        %718 = vmatpush1.bf16.msra.mxu0 %v655
        %719 = vmatprep.subr.bf16.mxu0 %v660
        %720 = vmatpush1.bf16.msra.mxu0 %v659
        %721 = vmatprep.subr.bf16.mxu0 %v664
        %722 = vmatpush1.bf16.msra.mxu0 %v663
        %723 = vmatprep.subr.bf16.mxu0 %v668
        %724 = vmatpush1.bf16.msra.mxu0 %v667
        %725 = vmatprep.subr.bf16.mxu0 %v672
        %726 = vmatpush1.bf16.msra.mxu0 %v671
        %727 = vmatprep.subr.bf16.mxu0 %v676
        %728 = vmatpush1.bf16.msra.mxu0 %v675
        %729 = vmatprep.subr.bf16.mxu0 %v680
        %730 = vmatpush1.bf16.msra.mxu0 %v679
        %731 = vmatprep.subr.bf16.mxu0 0
        %732 = vmatpush1.bf16.msra.mxu0 0
        %733 = vmatprep.subr.bf16.mxu0 0
        %734 = vmatpush1.bf16.msra.mxu0 0
        %735 = vmatprep.subr.bf16.mxu0 0
        %736 = vmatpush1.bf16.msra.mxu0 0
        %737 = vmatprep.subr.bf16.mxu0 0
        %738 = vmatpush1.bf16.msra.mxu0 0
        %739 = vmatprep.subr.bf16.mxu0 0
        %740 = vmatpush1.bf16.msra.mxu0 0
        %741 = vmatprep.subr.bf16.mxu0 0
        %742 = vmatpush1.bf16.msra.mxu0 0
        %743 = vmatprep.subr.bf16.mxu0 0
        %744 = vmatpush1.bf16.msra.mxu0 0
        %745 = vmatprep.subr.bf16.mxu0 0
        %746 = vmatpush1.bf16.msra.mxu0 0
        %747 = vmatprep.mubr.bf16.mxu0 0
        %748 = vmatmul.mubr.bf16.gmra.mrb[0].mxu0 %v554
        %v749 = vpop.f32.mrb[0].mxu0
        %v750 = vadd.f32 0.0, %v749
        %v751 = vpop.f32.mrb[0].mxu0
        %v752 = vadd.f32 0.0, %v751
        %v753 = vpop.f32.mrb[0].mxu0
        %v754 = vpop.f32.mrb[0].mxu0
        %755 = vdwg.mxu0
        %756 = vmatprep.subr.bf16.mxu0 %v654
        %757 = vmatpush1.bf16.msra.mxu0 %v653
        %758 = vmatprep.subr.bf16.mxu0 %v658
        %759 = vmatpush1.bf16.msra.mxu0 %v657
        %760 = vmatprep.subr.bf16.mxu0 %v662
        %761 = vmatpush1.bf16.msra.mxu0 %v661
        %762 = vmatprep.subr.bf16.mxu0 %v666
        %763 = vmatpush1.bf16.msra.mxu0 %v665
        %764 = vmatprep.subr.bf16.mxu0 %v670
        %765 = vmatpush1.bf16.msra.mxu0 %v669
        %766 = vmatprep.subr.bf16.mxu0 %v674
        %767 = vmatpush1.bf16.msra.mxu0 %v673
        %768 = vmatprep.subr.bf16.mxu0 %v678
        %769 = vmatpush1.bf16.msra.mxu0 %v677
        %770 = vmatprep.subr.bf16.mxu0 %v682
        %771 = vmatpush1.bf16.msra.mxu0 %v681
        %772 = vmatprep.subr.bf16.mxu0 0
        %773 = vmatpush1.bf16.msra.mxu0 0
        %774 = vmatprep.subr.bf16.mxu0 0
        %775 = vmatpush1.bf16.msra.mxu0 0
        %776 = vmatprep.subr.bf16.mxu0 0
        %777 = vmatpush1.bf16.msra.mxu0 0
        %778 = vmatprep.subr.bf16.mxu0 0
        %779 = vmatpush1.bf16.msra.mxu0 0
        %780 = vmatprep.subr.bf16.mxu0 0
        %781 = vmatpush1.bf16.msra.mxu0 0
        %782 = vmatprep.subr.bf16.mxu0 0
        %783 = vmatpush1.bf16.msra.mxu0 0
        %784 = vmatprep.subr.bf16.mxu0 0
        %785 = vmatpush1.bf16.msra.mxu0 0
        %786 = vmatprep.subr.bf16.mxu0 0
        %787 = vmatpush1.bf16.msra.mxu0 0
        %788 = vmatprep.mubr.bf16.mxu0 0
        %789 = vmatmul.mubr.bf16.gmra.mrb[0].mxu0 %v554
        %v790 = vpop.f32.mrb[0].mxu0
        %v791 = vadd.f32 0.0, %v790
        %v792 = vpop.f32.mrb[0].mxu0
        %v793 = vadd.f32 0.0, %v792
        %v794 = vpop.f32.mrb[0].mxu0
        %v795 = vpop.f32.mrb[0].mxu0
        %796 = vdwg.mxu0
        %v797 = vadd.f32 %v549, %v750
        %v798 = vadd.f32 %v550, %v752
        %v799 = vadd.f32 %v551, %v791
        %v800 = vadd.f32 %v552, %v793
        %v801 = vxor.u32 %v797, 2147483648
        %v802 = vmul.f32 %v801, 1.442695
        %v803 = vpow.pop %v802
        %v804 = vadd.f32 %v803, 1.0
        %v805 = vrcp.pop %v804
        %v806 = vmul.f32 1.0, %v805
        %v807 = vxor.u32 %v798, 2147483648
        %v808 = vmul.f32 %v807, 1.442695
        %v809 = vpow.pop %v808
        %v810 = vadd.f32 %v809, 1.0
        %v811 = vrcp.pop %v810
        %v812 = vmul.f32 1.0, %v811
        %v813 = vtanh.pop %v799
        %v814 = vxor.u32 %v800, 2147483648
        %v815 = vmul.f32 %v814, 1.442695
        %v816 = vpow.pop %v815
        %v817 = vadd.f32 %v816, 1.0
        %v818 = vrcp.pop %v817
        %v819 = vmul.f32 1.0, %v818
        %v820 = vld [vmem:[#allocation5] sm:$0xff]
        %v821 = vmul.f32 %v812, %v820
        %v822 = vmul.f32 %v806, %v813
        %v823 = vadd.f32 %v821, %v822
        %v824 = vtanh.pop %v823
        %v825 = vmul.f32 %v819, %v824
        %826 = vst [vmem:[#allocation5] sm:$0xff] %v823
        %827 = vst [vmem:[#allocation4] sm:$0xff] %v825
        %828 = vst [vmem:[#allocation3] sm:$0xff] %v825
        %s829 = scalar_lea.vmem [#allocation2], 32
        %v830 = vld [vmem:[%s829] sm:$0xff]
        %v831 = vld [vmem:[%s829 + $0x8] sm:$0xff]
        %v832 = vld [vmem:[%s829 + $0x10] sm:$0xff]
        %v833 = vld [vmem:[%s829 + $0x18] sm:$0xff]
        %v834 = vld [vmem:[#allocation4] sm:$0xff]
        %v835 = vpack.c.bf16 %v834, %v834
        %836 = vmatprep.subr.bf16.mxu0 %v652
        %837 = vmatpush1.bf16.msra.mxu0 %v651
        %838 = vmatprep.subr.bf16.mxu0 %v656
        %839 = vmatpush1.bf16.msra.mxu0 %v655
        %840 = vmatprep.subr.bf16.mxu0 %v660
        %841 = vmatpush1.bf16.msra.mxu0 %v659
        %842 = vmatprep.subr.bf16.mxu0 %v664
        %843 = vmatpush1.bf16.msra.mxu0 %v663
        %844 = vmatprep.subr.bf16.mxu0 %v668
        %845 = vmatpush1.bf16.msra.mxu0 %v667
        %846 = vmatprep.subr.bf16.mxu0 %v672
        %847 = vmatpush1.bf16.msra.mxu0 %v671
        %848 = vmatprep.subr.bf16.mxu0 %v676
        %849 = vmatpush1.bf16.msra.mxu0 %v675
        %850 = vmatprep.subr.bf16.mxu0 %v680
        %851 = vmatpush1.bf16.msra.mxu0 %v679
        %852 = vmatprep.subr.bf16.mxu0 0
        %853 = vmatpush1.bf16.msra.mxu0 0
        %854 = vmatprep.subr.bf16.mxu0 0
        %855 = vmatpush1.bf16.msra.mxu0 0
        %856 = vmatprep.subr.bf16.mxu0 0
        %857 = vmatpush1.bf16.msra.mxu0 0
        %858 = vmatprep.subr.bf16.mxu0 0
        %859 = vmatpush1.bf16.msra.mxu0 0
        %860 = vmatprep.subr.bf16.mxu0 0
        %861 = vmatpush1.bf16.msra.mxu0 0
        %862 = vmatprep.subr.bf16.mxu0 0
        %863 = vmatpush1.bf16.msra.mxu0 0
        %864 = vmatprep.subr.bf16.mxu0 0
        %865 = vmatpush1.bf16.msra.mxu0 0
        %866 = vmatprep.subr.bf16.mxu0 0
        %867 = vmatpush1.bf16.msra.mxu0 0
        %868 = vmatprep.mubr.bf16.mxu0 0
        %869 = vmatmul.mubr.bf16.gmra.mrb[0].mxu0 %v835
        %v870 = vpop.f32.mrb[0].mxu0
        %v871 = vadd.f32 0.0, %v870
        %v872 = vpop.f32.mrb[0].mxu0
        %v873 = vadd.f32 0.0, %v872
        %v874 = vpop.f32.mrb[0].mxu0
        %v875 = vpop.f32.mrb[0].mxu0
        %876 = vdwg.mxu0
        %877 = vmatprep.subr.bf16.mxu0 %v654
        %878 = vmatpush1.bf16.msra.mxu0 %v653
        %879 = vmatprep.subr.bf16.mxu0 %v658
        %880 = vmatpush1.bf16.msra.mxu0 %v657
        %881 = vmatprep.subr.bf16.mxu0 %v662
        %882 = vmatpush1.bf16.msra.mxu0 %v661
        %883 = vmatprep.subr.bf16.mxu0 %v666
        %884 = vmatpush1.bf16.msra.mxu0 %v665
        %885 = vmatprep.subr.bf16.mxu0 %v670
        %886 = vmatpush1.bf16.msra.mxu0 %v669
        %887 = vmatprep.subr.bf16.mxu0 %v674
        %888 = vmatpush1.bf16.msra.mxu0 %v673
        %889 = vmatprep.subr.bf16.mxu0 %v678
        %890 = vmatpush1.bf16.msra.mxu0 %v677
        %891 = vmatprep.subr.bf16.mxu0 %v682
        %892 = vmatpush1.bf16.msra.mxu0 %v681
        %893 = vmatprep.subr.bf16.mxu0 0
        %894 = vmatpush1.bf16.msra.mxu0 0
        %895 = vmatprep.subr.bf16.mxu0 0
        %896 = vmatpush1.bf16.msra.mxu0 0
        %897 = vmatprep.subr.bf16.mxu0 0
        %898 = vmatpush1.bf16.msra.mxu0 0
        %899 = vmatprep.subr.bf16.mxu0 0
        %900 = vmatpush1.bf16.msra.mxu0 0
        %901 = vmatprep.subr.bf16.mxu0 0
        %902 = vmatpush1.bf16.msra.mxu0 0
        %903 = vmatprep.subr.bf16.mxu0 0
        %904 = vmatpush1.bf16.msra.mxu0 0
        %905 = vmatprep.subr.bf16.mxu0 0
        %906 = vmatpush1.bf16.msra.mxu0 0
        %907 = vmatprep.subr.bf16.mxu0 0
        %908 = vmatpush1.bf16.msra.mxu0 0
        %909 = vmatprep.mubr.bf16.mxu0 0
        %910 = vmatmul.mubr.bf16.gmra.mrb[0].mxu0 %v835
        %v911 = vpop.f32.mrb[0].mxu0
        %v912 = vadd.f32 0.0, %v911
        %v913 = vpop.f32.mrb[0].mxu0
        %v914 = vadd.f32 0.0, %v913
        %v915 = vpop.f32.mrb[0].mxu0
        %v916 = vpop.f32.mrb[0].mxu0
        %917 = vdwg.mxu0
        %v918 = vadd.f32 %v830, %v871
        %v919 = vadd.f32 %v831, %v873
        %v920 = vadd.f32 %v832, %v912
        %v921 = vadd.f32 %v833, %v914
        %v922 = vxor.u32 %v918, 2147483648
        %v923 = vmul.f32 %v922, 1.442695
        %v924 = vpow.pop %v923
        %v925 = vadd.f32 %v924, 1.0
        %v926 = vrcp.pop %v925
        %v927 = vmul.f32 1.0, %v926
        %v928 = vxor.u32 %v919, 2147483648
        %v929 = vmul.f32 %v928, 1.442695
        %v930 = vpow.pop %v929
        %v931 = vadd.f32 %v930, 1.0
        %v932 = vrcp.pop %v931
        %v933 = vmul.f32 1.0, %v932
        %v934 = vtanh.pop %v920
        %v935 = vxor.u32 %v921, 2147483648
        %v936 = vmul.f32 %v935, 1.442695
        %v937 = vpow.pop %v936
        %v938 = vadd.f32 %v937, 1.0
        %v939 = vrcp.pop %v938
        %v940 = vmul.f32 1.0, %v939
        %v941 = vld [vmem:[#allocation5] sm:$0xff]
        %v942 = vmul.f32 %v933, %v941
        %v943 = vmul.f32 %v927, %v934
        %v944 = vadd.f32 %v942, %v943
        %v945 = vtanh.pop %v944
        %v946 = vmul.f32 %v940, %v945
        %947 = vst [vmem:[#allocation5] sm:$0xff] %v944
        %948 = vst [vmem:[#allocation4] sm:$0xff] %v946
        %s949 = scalar_lea.vmem [#allocation3], 8
        %950 = vst [vmem:[%s949] sm:$0xff] %v946
        %s951 = scalar_lea.vmem [#allocation2], 64
        %v952 = vld [vmem:[%s951] sm:$0xff]
        %v953 = vld [vmem:[%s951 + $0x8] sm:$0xff]
        %v954 = vld [vmem:[%s951 + $0x10] sm:$0xff]
        %v955 = vld [vmem:[%s951 + $0x18] sm:$0xff]
        %v956 = vld [vmem:[#allocation4] sm:$0xff]
        %v957 = vpack.c.bf16 %v956, %v956
        %958 = vmatprep.subr.bf16.mxu0 %v652
        %959 = vmatpush1.bf16.msra.mxu0 %v651
        %960 = vmatprep.subr.bf16.mxu0 %v656
        %961 = vmatpush1.bf16.msra.mxu0 %v655
        %962 = vmatprep.subr.bf16.mxu0 %v660
        %963 = vmatpush1.bf16.msra.mxu0 %v659
        %964 = vmatprep.subr.bf16.mxu0 %v664
        %965 = vmatpush1.bf16.msra.mxu0 %v663
        %966 = vmatprep.subr.bf16.mxu0 %v668
        %967 = vmatpush1.bf16.msra.mxu0 %v667
        %968 = vmatprep.subr.bf16.mxu0 %v672
        %969 = vmatpush1.bf16.msra.mxu0 %v671
        %970 = vmatprep.subr.bf16.mxu0 %v676
        %971 = vmatpush1.bf16.msra.mxu0 %v675
        %972 = vmatprep.subr.bf16.mxu0 %v680
        %973 = vmatpush1.bf16.msra.mxu0 %v679
        %974 = vmatprep.subr.bf16.mxu0 0
        %975 = vmatpush1.bf16.msra.mxu0 0
        %976 = vmatprep.subr.bf16.mxu0 0
        %977 = vmatpush1.bf16.msra.mxu0 0
        %978 = vmatprep.subr.bf16.mxu0 0
        %979 = vmatpush1.bf16.msra.mxu0 0
        %980 = vmatprep.subr.bf16.mxu0 0
        %981 = vmatpush1.bf16.msra.mxu0 0
        %982 = vmatprep.subr.bf16.mxu0 0
        %983 = vmatpush1.bf16.msra.mxu0 0
        %984 = vmatprep.subr.bf16.mxu0 0
        %985 = vmatpush1.bf16.msra.mxu0 0
        %986 = vmatprep.subr.bf16.mxu0 0
        %987 = vmatpush1.bf16.msra.mxu0 0
        %988 = vmatprep.subr.bf16.mxu0 0
        %989 = vmatpush1.bf16.msra.mxu0 0
        %990 = vmatprep.mubr.bf16.mxu0 0
        %991 = vmatmul.mubr.bf16.gmra.mrb[0].mxu0 %v957
        %v992 = vpop.f32.mrb[0].mxu0
        %v993 = vadd.f32 0.0, %v992
        %v994 = vpop.f32.mrb[0].mxu0
        %v995 = vadd.f32 0.0, %v994
        %v996 = vpop.f32.mrb[0].mxu0
        %v997 = vpop.f32.mrb[0].mxu0
        %998 = vdwg.mxu0
        %999 = vmatprep.subr.bf16.mxu0 %v654
        %1000 = vmatpush1.bf16.msra.mxu0 %v653
        %1001 = vmatprep.subr.bf16.mxu0 %v658
        %1002 = vmatpush1.bf16.msra.mxu0 %v657
        %1003 = vmatprep.subr.bf16.mxu0 %v662
        %1004 = vmatpush1.bf16.msra.mxu0 %v661
        %1005 = vmatprep.subr.bf16.mxu0 %v666
        %1006 = vmatpush1.bf16.msra.mxu0 %v665
        %1007 = vmatprep.subr.bf16.mxu0 %v670
        %1008 = vmatpush1.bf16.msra.mxu0 %v669
        %1009 = vmatprep.subr.bf16.mxu0 %v674
        %1010 = vmatpush1.bf16.msra.mxu0 %v673
        %1011 = vmatprep.subr.bf16.mxu0 %v678
        %1012 = vmatpush1.bf16.msra.mxu0 %v677
        %1013 = vmatprep.subr.bf16.mxu0 %v682
        %1014 = vmatpush1.bf16.msra.mxu0 %v681
        %1015 = vmatprep.subr.bf16.mxu0 0
        %1016 = vmatpush1.bf16.msra.mxu0 0
        %1017 = vmatprep.subr.bf16.mxu0 0
        %1018 = vmatpush1.bf16.msra.mxu0 0
        %1019 = vmatprep.subr.bf16.mxu0 0
        %1020 = vmatpush1.bf16.msra.mxu0 0
        %1021 = vmatprep.subr.bf16.mxu0 0
        %1022 = vmatpush1.bf16.msra.mxu0 0
        %1023 = vmatprep.subr.bf16.mxu0 0
        %1024 = vmatpush1.bf16.msra.mxu0 0
        %1025 = vmatprep.subr.bf16.mxu0 0
        %1026 = vmatpush1.bf16.msra.mxu0 0
        %1027 = vmatprep.subr.bf16.mxu0 0
        %1028 = vmatpush1.bf16.msra.mxu0 0
        %1029 = vmatprep.subr.bf16.mxu0 0
        %1030 = vmatpush1.bf16.msra.mxu0 0
        %1031 = vmatprep.mubr.bf16.mxu0 0
        %1032 = vmatmul.mubr.bf16.gmra.mrb[0].mxu0 %v957
        %v1033 = vpop.f32.mrb[0].mxu0
        %v1034 = vadd.f32 0.0, %v1033
        %v1035 = vpop.f32.mrb[0].mxu0
        %v1036 = vadd.f32 0.0, %v1035
        %v1037 = vpop.f32.mrb[0].mxu0
        %v1038 = vpop.f32.mrb[0].mxu0
        %1039 = vdwg.mxu0
        %v1040 = vadd.f32 %v952, %v993
        %v1041 = vadd.f32 %v953, %v995
        %v1042 = vadd.f32 %v954, %v1034
        %v1043 = vadd.f32 %v955, %v1036
        %v1044 = vxor.u32 %v1040, 2147483648
        %v1045 = vmul.f32 %v1044, 1.442695
        %v1046 = vpow.pop %v1045
        %v1047 = vadd.f32 %v1046, 1.0
        %v1048 = vrcp.pop %v1047
        %v1049 = vmul.f32 1.0, %v1048
        %v1050 = vxor.u32 %v1041, 2147483648
        %v1051 = vmul.f32 %v1050, 1.442695
        %v1052 = vpow.pop %v1051
        %v1053 = vadd.f32 %v1052, 1.0
        %v1054 = vrcp.pop %v1053
        %v1055 = vmul.f32 1.0, %v1054
        %v1056 = vtanh.pop %v1042
        %v1057 = vxor.u32 %v1043, 2147483648
        %v1058 = vmul.f32 %v1057, 1.442695
        %v1059 = vpow.pop %v1058
        %v1060 = vadd.f32 %v1059, 1.0
        %v1061 = vrcp.pop %v1060
        %v1062 = vmul.f32 1.0, %v1061
        %v1063 = vld [vmem:[#allocation5] sm:$0xff]
        %v1064 = vmul.f32 %v1055, %v1063
        %v1065 = vmul.f32 %v1049, %v1056
        %v1066 = vadd.f32 %v1064, %v1065
        %v1067 = vtanh.pop %v1066
        %v1068 = vmul.f32 %v1062, %v1067
        %1069 = vst [vmem:[#allocation5] sm:$0xff] %v1066
        %1070 = vst [vmem:[#allocation4] sm:$0xff] %v1068
        %s1071 = scalar_lea.vmem [#allocation3], 16
        %1072 = vst [vmem:[%s1071] sm:$0xff] %v1068
        %s1073 = scalar_lea.vmem [#allocation2], 96
        %v1074 = vld [vmem:[%s1073] sm:$0xff]
        %v1075 = vld [vmem:[%s1073 + $0x8] sm:$0xff]
        %v1076 = vld [vmem:[%s1073 + $0x10] sm:$0xff]
        %v1077 = vld [vmem:[%s1073 + $0x18] sm:$0xff]
        %v1078 = vld [vmem:[#allocation4] sm:$0xff]
        %v1079 = vpack.c.bf16 %v1078, %v1078
        %1080 = vmatprep.subr.bf16.mxu0 %v652
        %1081 = vmatpush1.bf16.msra.mxu0 %v651
        %1082 = vmatprep.subr.bf16.mxu0 %v656
        %1083 = vmatpush1.bf16.msra.mxu0 %v655
        %1084 = vmatprep.subr.bf16.mxu0 %v660
        %1085 = vmatpush1.bf16.msra.mxu0 %v659
        %1086 = vmatprep.subr.bf16.mxu0 %v664
        %1087 = vmatpush1.bf16.msra.mxu0 %v663
        %1088 = vmatprep.subr.bf16.mxu0 %v668
        %1089 = vmatpush1.bf16.msra.mxu0 %v667
        %1090 = vmatprep.subr.bf16.mxu0 %v672
        %1091 = vmatpush1.bf16.msra.mxu0 %v671
        %1092 = vmatprep.subr.bf16.mxu0 %v676
        %1093 = vmatpush1.bf16.msra.mxu0 %v675
        %1094 = vmatprep.subr.bf16.mxu0 %v680
        %1095 = vmatpush1.bf16.msra.mxu0 %v679
        %1096 = vmatprep.subr.bf16.mxu0 0
        %1097 = vmatpush1.bf16.msra.mxu0 0
        %1098 = vmatprep.subr.bf16.mxu0 0
        %1099 = vmatpush1.bf16.msra.mxu0 0
        %1100 = vmatprep.subr.bf16.mxu0 0
        %1101 = vmatpush1.bf16.msra.mxu0 0
        %1102 = vmatprep.subr.bf16.mxu0 0
        %1103 = vmatpush1.bf16.msra.mxu0 0
        %1104 = vmatprep.subr.bf16.mxu0 0
        %1105 = vmatpush1.bf16.msra.mxu0 0
        %1106 = vmatprep.subr.bf16.mxu0 0
        %1107 = vmatpush1.bf16.msra.mxu0 0
        %1108 = vmatprep.subr.bf16.mxu0 0
        %1109 = vmatpush1.bf16.msra.mxu0 0
        %1110 = vmatprep.subr.bf16.mxu0 0
        %1111 = vmatpush1.bf16.msra.mxu0 0
        %1112 = vmatprep.mubr.bf16.mxu0 0
        %1113 = vmatmul.mubr.bf16.gmra.mrb[0].mxu0 %v1079
        %v1114 = vpop.f32.mrb[0].mxu0
        %v1115 = vadd.f32 0.0, %v1114
        %v1116 = vpop.f32.mrb[0].mxu0
        %v1117 = vadd.f32 0.0, %v1116
        %v1118 = vpop.f32.mrb[0].mxu0
        %v1119 = vpop.f32.mrb[0].mxu0
        %1120 = vdwg.mxu0
        %1121 = vmatprep.subr.bf16.mxu0 %v654
        %1122 = vmatpush1.bf16.msra.mxu0 %v653
        %1123 = vmatprep.subr.bf16.mxu0 %v658
        %1124 = vmatpush1.bf16.msra.mxu0 %v657
        %1125 = vmatprep.subr.bf16.mxu0 %v662
        %1126 = vmatpush1.bf16.msra.mxu0 %v661
        %1127 = vmatprep.subr.bf16.mxu0 %v666
        %1128 = vmatpush1.bf16.msra.mxu0 %v665
        %1129 = vmatprep.subr.bf16.mxu0 %v670
        %1130 = vmatpush1.bf16.msra.mxu0 %v669
        %1131 = vmatprep.subr.bf16.mxu0 %v674
        %1132 = vmatpush1.bf16.msra.mxu0 %v673
        %1133 = vmatprep.subr.bf16.mxu0 %v678
        %1134 = vmatpush1.bf16.msra.mxu0 %v677
        %1135 = vmatprep.subr.bf16.mxu0 %v682
        %1136 = vmatpush1.bf16.msra.mxu0 %v681
        %1137 = vmatprep.subr.bf16.mxu0 0
        %1138 = vmatpush1.bf16.msra.mxu0 0
        %1139 = vmatprep.subr.bf16.mxu0 0
        %1140 = vmatpush1.bf16.msra.mxu0 0
        %1141 = vmatprep.subr.bf16.mxu0 0
        %1142 = vmatpush1.bf16.msra.mxu0 0
        %1143 = vmatprep.subr.bf16.mxu0 0
        %1144 = vmatpush1.bf16.msra.mxu0 0
        %1145 = vmatprep.subr.bf16.mxu0 0
        %1146 = vmatpush1.bf16.msra.mxu0 0
        %1147 = vmatprep.subr.bf16.mxu0 0
        %1148 = vmatpush1.bf16.msra.mxu0 0
        %1149 = vmatprep.subr.bf16.mxu0 0
        %1150 = vmatpush1.bf16.msra.mxu0 0
        %1151 = vmatprep.subr.bf16.mxu0 0
        %1152 = vmatpush1.bf16.msra.mxu0 0
        %1153 = vmatprep.mubr.bf16.mxu0 0
        %1154 = vmatmul.mubr.bf16.gmra.mrb[0].mxu0 %v1079
        %v1155 = vpop.f32.mrb[0].mxu0
        %v1156 = vadd.f32 0.0, %v1155
        %v1157 = vpop.f32.mrb[0].mxu0
        %v1158 = vadd.f32 0.0, %v1157
        %v1159 = vpop.f32.mrb[0].mxu0
        %v1160 = vpop.f32.mrb[0].mxu0
        %1161 = vdwg.mxu0
        %v1162 = vadd.f32 %v1074, %v1115
        %v1163 = vadd.f32 %v1075, %v1117
        %v1164 = vadd.f32 %v1076, %v1156
        %v1165 = vadd.f32 %v1077, %v1158
        %v1166 = vxor.u32 %v1162, 2147483648
        %v1167 = vmul.f32 %v1166, 1.442695
        %v1168 = vpow.pop %v1167
        %v1169 = vadd.f32 %v1168, 1.0
        %v1170 = vrcp.pop %v1169
        %v1171 = vmul.f32 1.0, %v1170
        %v1172 = vxor.u32 %v1163, 2147483648
        %v1173 = vmul.f32 %v1172, 1.442695
        %v1174 = vpow.pop %v1173
        %v1175 = vadd.f32 %v1174, 1.0
        %v1176 = vrcp.pop %v1175
        %v1177 = vmul.f32 1.0, %v1176
        %v1178 = vtanh.pop %v1164
        %v1179 = vxor.u32 %v1165, 2147483648
        %v1180 = vmul.f32 %v1179, 1.442695
        %v1181 = vpow.pop %v1180
        %v1182 = vadd.f32 %v1181, 1.0
        %v1183 = vrcp.pop %v1182
        %v1184 = vmul.f32 1.0, %v1183
        %v1185 = vld [vmem:[#allocation5] sm:$0xff]
        %v1186 = vmul.f32 %v1177, %v1185
        %v1187 = vmul.f32 %v1171, %v1178
        %v1188 = vadd.f32 %v1186, %v1187
        %v1189 = vtanh.pop %v1188
        %v1190 = vmul.f32 %v1184, %v1189
        %1191 = vst [vmem:[#allocation5] sm:$0xff] %v1188
        %1192 = vst [vmem:[#allocation4] sm:$0xff] %v1190
        %s1193 = scalar_lea.vmem [#allocation3], 24
        %1194 = vst [vmem:[%s1193] sm:$0xff] %v1190
        %v1195 = vld [vmem:[#allocation3] sm:$0xff]
        %v1196 = vld [vmem:[#allocation3 + $0x8] sm:$0xff]
        %v1197 = vld [vmem:[#allocation3 + $0x10] sm:$0xff]
        %v1198 = vld [vmem:[#allocation3 + $0x18] sm:$0xff]
        %v1199 = vpack.c.bf16 %v1196, %v1195
        %v1200 = vpack.c.bf16 %v1198, %v1197
        %v1201 = vld [vmem:[#allocation11] sm:$0xf]
        %v1202 = vld [vmem:[#allocation11 + $0x4] sm:$0xf]
        %v1203 = vld [vmem:[#allocation11 + $0x8] sm:$0xf]
        %v1204 = vld [vmem:[#allocation11 + $0xc] sm:$0xf]
        %v1205 = vld [vmem:[#allocation11 + $0x10] sm:$0xf]
        %v1206 = vld [vmem:[#allocation11 + $0x14] sm:$0xf]
        %v1207 = vld [vmem:[#allocation11 + $0x18] sm:$0xf]
        %v1208 = vld [vmem:[#allocation11 + $0x1c] sm:$0xf]
        %v1209 = vld [vmem:[#allocation11 + $0x20] sm:$0xf]
        %v1210 = vld [vmem:[#allocation11 + $0x24] sm:$0xf]
        %v1211 = vld [vmem:[#allocation11 + $0x28] sm:$0xf]
        %v1212 = vld [vmem:[#allocation11 + $0x2c] sm:$0xf]
        %v1213 = vld [vmem:[#allocation11 + $0x30] sm:$0xf]
        %v1214 = vld [vmem:[#allocation11 + $0x34] sm:$0xf]
        %v1215 = vld [vmem:[#allocation11 + $0x38] sm:$0xf]
        %v1216 = vld [vmem:[#allocation11 + $0x3c] sm:$0xf]
        %v1217 = vld [vmem:[%s5] sm:$0x1]
        %v1219 = vlaneseq
        %v1220 = vshrl.u32 %v1219, 7
        %v1221 = vsub.s32 0, %v1220
        %v1222 = vrot.slane %v1217, %v1221
        %v1240 = vunpack.c.l.b16 %v1201
        %v1241 = vunpack.c.l.b16 %v1202
        %v1242 = vunpack.c.l.b16 %v1203
        %v1243 = vunpack.c.l.b16 %v1204
        %v1244 = vunpack.c.l.b16 %v1205
        %v1245 = vunpack.c.l.b16 %v1206
        %v1246 = vunpack.c.l.b16 %v1207
        %v1247 = vunpack.c.l.b16 %v1208
        %v1248 = vunpack.c.l.b16 %v1209
        %v1249 = vunpack.c.l.b16 %v1210
        %v1250 = vunpack.c.l.b16 %v1211
        %v1251 = vunpack.c.l.b16 %v1212
        %v1252 = vunpack.c.l.b16 %v1213
        %v1253 = vunpack.c.l.b16 %v1214
        %v1254 = vunpack.c.l.b16 %v1215
        %v1255 = vunpack.c.l.b16 %v1216
        %v1256 = vpack.c.b16 %v1241, %v1240
        %v1257 = vpack.c.b16 %v1243, %v1242
        %v1258 = vpack.c.b16 %v1245, %v1244
        %v1259 = vpack.c.b16 %v1247, %v1246
        %v1260 = vpack.c.b16 %v1249, %v1248
        %v1261 = vpack.c.b16 %v1251, %v1250
        %v1262 = vpack.c.b16 %v1253, %v1252
        %v1263 = vpack.c.b16 %v1255, %v1254
        %1272 = vmatprep.subr.bf16.mxu0 0
        %1273 = vmatpush1.bf16.msra.mxu0 %v1256
        %1274 = vmatprep.subr.bf16.mxu0 0
        %1275 = vmatpush1.bf16.msra.mxu0 %v1257
        %1276 = vmatprep.subr.bf16.mxu0 0
        %1277 = vmatpush1.bf16.msra.mxu0 %v1258
        %1278 = vmatprep.subr.bf16.mxu0 0
        %1279 = vmatpush1.bf16.msra.mxu0 %v1259
        %1280 = vmatprep.subr.bf16.mxu0 0
        %1281 = vmatpush1.bf16.msra.mxu0 %v1260
        %1282 = vmatprep.subr.bf16.mxu0 0
        %1283 = vmatpush1.bf16.msra.mxu0 %v1261
        %1284 = vmatprep.subr.bf16.mxu0 0
        %1285 = vmatpush1.bf16.msra.mxu0 %v1262
        %1286 = vmatprep.subr.bf16.mxu0 0
        %1287 = vmatpush1.bf16.msra.mxu0 %v1263
        %1288 = vmatprep.subr.bf16.mxu0 0
        %1289 = vmatpush1.bf16.msra.mxu0 0
        %1290 = vmatprep.subr.bf16.mxu0 0
        %1291 = vmatpush1.bf16.msra.mxu0 0
        %1292 = vmatprep.subr.bf16.mxu0 0
        %1293 = vmatpush1.bf16.msra.mxu0 0
        %1294 = vmatprep.subr.bf16.mxu0 0
        %1295 = vmatpush1.bf16.msra.mxu0 0
        %1296 = vmatprep.subr.bf16.mxu0 0
        %1297 = vmatpush1.bf16.msra.mxu0 0
        %1298 = vmatprep.subr.bf16.mxu0 0
        %1299 = vmatpush1.bf16.msra.mxu0 0
        %1300 = vmatprep.subr.bf16.mxu0 0
        %1301 = vmatpush1.bf16.msra.mxu0 0
        %1302 = vmatprep.subr.bf16.mxu0 0
        %1303 = vmatpush1.bf16.msra.mxu0 0
        %1304 = vmatprep.mubr.bf16.mxu0 0
        %1305 = vmatmul.mubr.bf16.gmra.mrb[0].mxu0 %v1199
        %v1306 = vpop.f32.mrb[0].mxu0
        %v1307 = vadd.f32 %v1222, %v1306
        %v1308 = vpop.f32.mrb[0].mxu0
        %v1309 = vpop.f32.mrb[0].mxu0
        %v1310 = vadd.f32 %v1222, %v1309
        %v1311 = vpop.f32.mrb[0].mxu0
        %1312 = vmatprep.mubr.bf16.mxu0 0
        %1313 = vmatmul.mubr.bf16.gmra.mrb[0].mxu0 %v1200
        %v1314 = vpop.f32.mrb[0].mxu0
        %v1315 = vadd.f32 %v1222, %v1314
        %v1316 = vpop.f32.mrb[0].mxu0
        %v1317 = vpop.f32.mrb[0].mxu0
        %v1318 = vadd.f32 %v1222, %v1317
        %v1319 = vpop.f32.mrb[0].mxu0
        %1320 = vdwg.mxu0
        %1321 = vmax.xlane.f32.xlu0 %v1307
        %v1322 = vpop.xlane.xlu0 %1321
        %1323 = vmax.xlane.f32.xlu0 %v1310
        %v1324 = vpop.xlane.xlu0 %1323
        %1325 = vmax.xlane.f32.xlu0 %v1315
        %v1326 = vpop.xlane.xlu0 %1325
        %1327 = vmax.xlane.f32.xlu0 %v1318
        %v1328 = vpop.xlane.xlu0 %1327
        %v1329 = vsub.f32 %v1307, %v1322
        %v1330 = vsub.f32 %v1310, %v1324
        %v1331 = vsub.f32 %v1315, %v1326
        %v1332 = vsub.f32 %v1318, %v1328
        %v1333 = vmul.f32 %v1329, 1.442695
        %v1334 = vpow.pop %v1333
        %v1335 = vmul.f32 %v1330, 1.442695
        %v1336 = vpow.pop %v1335
        %v1337 = vmul.f32 %v1331, 1.442695
        %v1338 = vpow.pop %v1337
        %v1339 = vmul.f32 %v1332, 1.442695
        %v1340 = vpow.pop %v1339
        %1341 = vadd.xlane.f32.xlu0 %v1334
        %v1342 = vpop.xlane.xlu0 %1341
        %1343 = vadd.xlane.f32.xlu0 %v1336
        %v1344 = vpop.xlane.xlu0 %1343
        %1345 = vadd.xlane.f32.xlu0 %v1338
        %v1346 = vpop.xlane.xlu0 %1345
        %1347 = vadd.xlane.f32.xlu0 %v1340
        %v1348 = vpop.xlane.xlu0 %1347
        %v1349 = vlog2.pop %v1342
        %v1350 = vmul.f32 %v1349, 0.6931472
        %v1351 = vlog2.pop %v1344
        %v1352 = vmul.f32 %v1351, 0.6931472
        %v1353 = vlog2.pop %v1346
        %v1354 = vmul.f32 %v1353, 0.6931472
        %v1355 = vlog2.pop %v1348
        %v1356 = vmul.f32 %v1355, 0.6931472
        %v1357 = vsub.f32 %v1329, %v1350
        %v1358 = vsub.f32 %v1330, %v1352
        %v1359 = vsub.f32 %v1331, %v1354
        %v1360 = vsub.f32 %v1332, %v1356
        %1361 = vst [vmem:[%s289] sm:$0xff] %v1357
        %1362 = vst [vmem:[%s289 + $0x8] sm:$0xff] %v1358
        %1363 = vst [vmem:[%s289 + $0x10] sm:$0xff] %v1359
        %1364 = vst [vmem:[%s289 + $0x18] sm:$0xff] %v1360
        %s1365 = sand.u32 %s161, 1
        %s1366 = scalar_lea.sflag [#allocation8], %s1365
        %s1367 = sand.u32 %s161, 1
        %s1368 = smul.addr %s1367, 32
        %s1369 = scalar_lea.vmem [#allocation12], %s1368
        // Predicated region
        $region61: #{tpu_custom_call.1} parent=43 // pred_check
          %p1370 = pneg %p171
        $region62: #{tpu_custom_call.1} parent=43 // pred_check_branch
          %1372 = sbr.rel (%p1370) target = $region64
        $region63: #{tpu_custom_call.1} parent=43 // pred_region
          %s1373 = smul.u32 4, %s22
          %s1375 = ssub.s32 512, 512
          %1376 = vsyncadd %s1366, %s1375
          %s1377 = smul.addr %s1373, 128
          %s1378 = scalar_lea.hbm %s6, %s1377
          %s1379 = sshll.u32 %s1369, 4
          %s1380 = int_to_ptr.vmem [resolvable:$true] %s1379
          %1385 = dma.vmem_to_hbm [thread:$0]  %s1380, 512, %s1378, %s1366, 128, 128, 8
        $region64: #{tpu_custom_call.1} parent=43 // pred_fallthru
          _
      $region44: #{tpu_custom_call.1} parent=5 // pred_fallthru
        _
      %p1386 = scmp.le.s32.totalorder 2, %s17
      // Predicated region
      $region65: #{tpu_custom_call.1} parent=5 // pred_check
        %p1387 = pneg %p1386
      $region66: #{tpu_custom_call.1} parent=5 // pred_check_branch
        %1389 = sbr.rel (%p1387) target = $region68
      $region67: #{tpu_custom_call.1} parent=5 // pred_region
        %s1390 = ssub.s32 %s17, 2
        // Predicated region
        $region69: #{tpu_custom_call.1} parent=67 // pred_check
          %p1391 = pneg %p177
        $region70: #{tpu_custom_call.1} parent=67 // pred_check_branch
          %1393 = sbr.rel (%p1391) target = $region72
        $region71: #{tpu_custom_call.1} parent=67 // pred_region
          %s1394 = sand.u32 %s162, 1
          %s1395 = scalar_lea.sflag [#allocation8], %s1394
          %s1396 = sand.u32 %s162, 1
          %s1397 = smul.addr %s1396, 32
          %s1398 = scalar_lea.vmem [#allocation12], %s1397
          %1399 = dma.done %s1395, 512
        $region72: #{tpu_custom_call.1} parent=67 // pred_fallthru
          _
      $region68: #{tpu_custom_call.1} parent=5 // pred_fallthru
        _
    $region6: #{tpu_custom_call.1} parent=1 // loop_footer
      %s21 = sadd.s32 1, %s17
    $region7: #{tpu_custom_call.1} parent=1 // loop_footer_branch
      %16 = sbr.rel target = $region3
    $region8: #{tpu_custom_call.1} parent=1 // loop_exit
      _
    %1400 = vsyncpa [#allocation7], 1
    %s1401 = scalar_lea.sflag [#allocation7], 1
    %1402 = vsyncpa %s1401, 1
    %1403 = vsyncpa [#allocation10], 1
    %1404 = vsyncpa [#allocation8], 1
    %s1405 = scalar_lea.sflag [#allocation8], 1
    %1406 = vsyncpa %s1405, 1

</llo_original>
